<compile_context>
chip_gen: v7x
topology: tpu7x:2x2x1
jax: 0.10.0
libtpu: 0.0.40
codegen_flags: <defaults>
</compile_context>

<pallas_src>
import jax
import jax.numpy as jnp
from jax.experimental import pallas as pl
from jax.experimental.pallas import tpu as pltpu  # noqa: F401  (TPU backend)

# ----------------------------- model config ---------------------------------
B = 2          # batch
S = 8          # sequence length
H = 32         # hidden size
NH = 4         # attention heads
HD = H // NH   # head dim
F = 64         # FFN inner size
VOCAB = 64     # vocabulary size
EPS = 1e-5
BS = B * S     # batch folded into rows
NEG_INF = -1e30


def _layer_norm(x, g, b):
    mu = jnp.mean(x, axis=-1, keepdims=True)
    var = jnp.mean((x - mu) ** 2, axis=-1, keepdims=True)
    return (x - mu) * jax.lax.rsqrt(var + EPS) * g + b


def transformer_kernel(ids_ref, tok_emb_ref, pos_ref, mask_ref,
                       wqkv_ref, bqkv_ref, wo_ref, bo_ref, g1_ref, b1_ref,
                       w1_ref, bf1_ref, w2_ref, bf2_ref, g2_ref, b2_ref,
                       out_ref):
    # ---- embedding: gather-free one-hot matmul + positional add -------------
    ids = ids_ref[...]                                             # (BS, 1) int32
    vocab_iota = jax.lax.broadcasted_iota(jnp.int32, (BS, VOCAB), 1)
    onehot = jnp.where(ids == vocab_iota, 1.0, 0.0)                # (BS, VOCAB) f32
    x = jnp.dot(onehot, tok_emb_ref[...], preferred_element_type=jnp.float32)
    x = x + pos_ref[...]                                           # (BS, H)

    # ---- fused QKV projection (1/sqrt(HD) pre-folded into Wq / bq) ----------
    qkv = jnp.dot(x, wqkv_ref[...], preferred_element_type=jnp.float32) + bqkv_ref[...]
    q = qkv[:, 0 * H:1 * H]
    k = qkv[:, 1 * H:2 * H]
    v = qkv[:, 2 * H:3 * H]

    # ---- multi-head self-attention, batch folded into the matmul rows ------
    mask = mask_ref[...]                                           # (BS, BS): 0 in-batch, -1e30 across
    ctx_heads = []
    for h in range(NH):                                            # static head loop (2D ops only)
        qh = q[:, h * HD:(h + 1) * HD]
        kh = k[:, h * HD:(h + 1) * HD]
        vh = v[:, h * HD:(h + 1) * HD]
        s = jnp.dot(qh, kh.T, preferred_element_type=jnp.float32) + mask   # (BS, BS)
        s = s - jnp.max(s, axis=-1, keepdims=True)
        p = jnp.exp(s)
        p = p * pl.reciprocal(jnp.sum(p, axis=-1, keepdims=True), approx=True)
        ctx_heads.append(jnp.dot(p, vh, preferred_element_type=jnp.float32))
    ctx = jnp.concatenate(ctx_heads, axis=-1)                      # (BS, H)

    attn_out = jnp.dot(ctx, wo_ref[...], preferred_element_type=jnp.float32) + bo_ref[...]
    x = _layer_norm(x + attn_out, g1_ref[...], b1_ref[...])

    # ---- feed-forward --------------------------------------------------------
    hdn = jnp.dot(x, w1_ref[...], preferred_element_type=jnp.float32) + bf1_ref[...]
    # TODO(synk): switch to approximate=False (erf) to match torch.nn.GELU
    # exactly once lax.erf lowering in Mosaic is confirmed; tanh-approx here.
    hdn = jax.nn.gelu(hdn, approximate=True)
    ffn_out = jnp.dot(hdn, w2_ref[...], preferred_element_type=jnp.float32) + bf2_ref[...]
    y = _layer_norm(x + ffn_out, g2_ref[...], b2_ref[...])         # (BS, H)

    # ---- lane-dense store: flatten each batch's (S, H) slab to one 256-lane row
    rows = []
    for b in range(B):
        yb = y[b * S:(b + 1) * S, :]
        rows.append(jnp.concatenate([yb[s:s + 1, :] for s in range(S)], axis=1))  # (1, S*H)
    out_ref[...] = jnp.concatenate(rows, axis=0)                   # (B, S*H)


# ----------------------------- parameters ------------------------------------
def init_params(key):
    """Raw (unfused) synthetic 'pretrained' parameters."""
    ks = jax.random.split(key, 8)
    sd = 0.02
    return {
        "tok_emb": jax.random.normal(ks[0], (VOCAB, H), jnp.float32) * sd,
        "pos_emb": jax.random.normal(ks[1], (S, H), jnp.float32) * sd,
        "wq": jax.random.normal(ks[2], (H, H), jnp.float32) * sd,
        "wk": jax.random.normal(ks[3], (H, H), jnp.float32) * sd,
        "wv": jax.random.normal(ks[4], (H, H), jnp.float32) * sd,
        "wo": jax.random.normal(ks[5], (H, H), jnp.float32) * sd,
        "bq": jnp.zeros((1, H), jnp.float32),
        "bk": jnp.zeros((1, H), jnp.float32),
        "bv": jnp.zeros((1, H), jnp.float32),
        "bo": jnp.zeros((1, H), jnp.float32),
        "g1": jnp.ones((1, H), jnp.float32),
        "b1": jnp.zeros((1, H), jnp.float32),
        "w1": jax.random.normal(ks[6], (H, F), jnp.float32) * sd,
        "bf1": jnp.zeros((1, F), jnp.float32),
        "w2": jax.random.normal(ks[7], (F, H), jnp.float32) * sd,
        "bf2": jnp.zeros((1, H), jnp.float32),
        "g2": jnp.ones((1, H), jnp.float32),
        "b2": jnp.zeros((1, H), jnp.float32),
    }


def prepare_params(p):
    """One-time host-side fusion/folding for the kernel (not per-call work)."""
    scale = 1.0 / float(HD) ** 0.5
    bid = jnp.arange(BS, dtype=jnp.int32) // S
    return {
        "tok_emb": p["tok_emb"],
        "pos": jnp.tile(p["pos_emb"], (B, 1)),                               # (BS, H)
        "mask": jnp.where(bid[:, None] == bid[None, :], 0.0, NEG_INF
                          ).astype(jnp.float32),                             # (BS, BS)
        "wqkv": jnp.concatenate([p["wq"] * scale, p["wk"], p["wv"]], axis=1),  # (H, 3H)
        "bqkv": jnp.concatenate([p["bq"] * scale, p["bk"], p["bv"]], axis=1),  # (1, 3H)
        "wo": p["wo"], "bo": p["bo"], "g1": p["g1"], "b1": p["b1"],
        "w1": p["w1"], "bf1": p["bf1"], "w2": p["w2"], "bf2": p["bf2"],
        "g2": p["g2"], "b2": p["b2"],
    }


_KERNEL_ARG_ORDER = ["tok_emb", "pos", "mask", "wqkv", "bqkv", "wo", "bo",
                     "g1", "b1", "w1", "bf1", "w2", "bf2", "g2", "b2"]


# ----------------------------- forward wrapper --------------------------------
def cust_transformer_forward(input_ids, fused):
    """input_ids: (B, S) int32 -> (B, S, H) f32 last hidden state."""
    ids = input_ids.reshape(BS, 1).astype(jnp.int32)
    args = [fused[n] for n in _KERNEL_ARG_ORDER]
    out_flat = pl.pallas_call(
        transformer_kernel,
        # single program, whole operands VMEM-resident (< 100 KB total);
        # lane-dense (256-wide) output, reshaped back to (B, S, H) below.
        out_shape=jax.ShapeDtypeStruct((B, S * H), jnp.float32),
    )(ids, *args)
    return out_flat.reshape(B, S, H)                 # == pt_model(input_ids)[0]


if __name__ == "__main__":
    key = jax.random.PRNGKey(0)
    pkey, dkey = jax.random.split(key)
    params = prepare_params(init_params(pkey))
    input_ids = jax.random.randint(dkey, (B, S), 0, VOCAB, dtype=jnp.int32)

    out = cust_transformer_forward(input_ids, params)
    out = jax.block_until_ready(out)
    assert out.shape == (B, S, H) and out.dtype == jnp.float32
    assert bool(jnp.all(jnp.isfinite(out)))
    print("KERNEL_OK")
</pallas_src>

<mosaic_0001>
module attributes {stable_mosaic.version = 11 : i64} {
  func.func @transformer_kernel(%arg0: memref<16x1xi32, #tpu.memory_space<vmem>>, %arg1: memref<64x32xf32, #tpu.memory_space<vmem>>, %arg2: memref<16x32xf32, #tpu.memory_space<vmem>>, %arg3: memref<16x16xf32, #tpu.memory_space<vmem>>, %arg4: memref<32x96xf32, #tpu.memory_space<vmem>>, %arg5: memref<1x96xf32, #tpu.memory_space<vmem>>, %arg6: memref<32x32xf32, #tpu.memory_space<vmem>>, %arg7: memref<1x32xf32, #tpu.memory_space<vmem>>, %arg8: memref<1x32xf32, #tpu.memory_space<vmem>>, %arg9: memref<1x32xf32, #tpu.memory_space<vmem>>, %arg10: memref<32x64xf32, #tpu.memory_space<vmem>>, %arg11: memref<1x64xf32, #tpu.memory_space<vmem>>, %arg12: memref<64x32xf32, #tpu.memory_space<vmem>>, %arg13: memref<1x32xf32, #tpu.memory_space<vmem>>, %arg14: memref<1x32xf32, #tpu.memory_space<vmem>>, %arg15: memref<1x32xf32, #tpu.memory_space<vmem>>, %arg16: memref<2x256xf32, #tpu.memory_space<vmem>>) attributes {dimension_semantics = [], scalar_prefetch = 0 : i64, scratch_operands = 0 : i64, tpu.core_type = #tpu.core_type<tc>} {
    %c0 = arith.constant 0 : index
    %c0_0 = arith.constant 0 : index
    %0 = vector.load %arg0[%c0, %c0_0] : memref<16x1xi32, #tpu.memory_space<vmem>>, vector<16x1xi32>
    %1 = tpu.iota {dimensions = array<i32: 1>} : vector<16x64xi32>
    %2 = vector.broadcast %0 : vector<16x1xi32> to vector<16x64xi32>
    %3 = arith.cmpi eq, %2, %1 : vector<16x64xi32>
    %cst = arith.constant 1.000000e+00 : f32
    %cst_1 = arith.constant 0.000000e+00 : f32
    %4 = vector.broadcast %cst : f32 to vector<16x64xf32>
    %5 = vector.broadcast %cst_1 : f32 to vector<16x64xf32>
    %6 = arith.select %3, %4, %5 : vector<16x64xi1>, vector<16x64xf32>
    %c0_2 = arith.constant 0 : index
    %c0_3 = arith.constant 0 : index
    %7 = vector.load %arg1[%c0_2, %c0_3] : memref<64x32xf32, #tpu.memory_space<vmem>>, vector<64x32xf32>
    %cst_4 = arith.constant dense<0.000000e+00> : vector<16x32xf32>
    %8 = tpu.matmul %6, %7, %cst_4 {dimension_numbers = #tpu.dot_dimension_numbers<[1], [0], [0], [1], [0, 0, 1, 1], [], []>} : vector<16x64xf32>, vector<64x32xf32>, vector<16x32xf32> -> vector<16x32xf32>
    %c0_5 = arith.constant 0 : index
    %c0_6 = arith.constant 0 : index
    %9 = vector.load %arg2[%c0_5, %c0_6] : memref<16x32xf32, #tpu.memory_space<vmem>>, vector<16x32xf32>
    %10 = arith.addf %8, %9 : vector<16x32xf32>
    %c0_7 = arith.constant 0 : index
    %c0_8 = arith.constant 0 : index
    %11 = vector.load %arg4[%c0_7, %c0_8] : memref<32x96xf32, #tpu.memory_space<vmem>>, vector<32x96xf32>
    %cst_9 = arith.constant dense<0.000000e+00> : vector<16x96xf32>
    %12 = tpu.matmul %10, %11, %cst_9 {dimension_numbers = #tpu.dot_dimension_numbers<[1], [0], [0], [1], [0, 0, 1, 1], [], []>} : vector<16x32xf32>, vector<32x96xf32>, vector<16x96xf32> -> vector<16x96xf32>
    %c0_10 = arith.constant 0 : index
    %c0_11 = arith.constant 0 : index
    %13 = vector.load %arg5[%c0_10, %c0_11] : memref<1x96xf32, #tpu.memory_space<vmem>>, vector<1x96xf32>
    %14 = vector.broadcast %13 : vector<1x96xf32> to vector<16x96xf32>
    %15 = arith.addf %12, %14 : vector<16x96xf32>
    %16 = vector.extract_strided_slice %15 {offsets = [0, 0], sizes = [16, 32], strides = [1, 1]} : vector<16x96xf32> to vector<16x32xf32>
    %17 = vector.extract_strided_slice %15 {offsets = [0, 32], sizes = [16, 32], strides = [1, 1]} : vector<16x96xf32> to vector<16x32xf32>
    %18 = vector.extract_strided_slice %15 {offsets = [0, 64], sizes = [16, 32], strides = [1, 1]} : vector<16x96xf32> to vector<16x32xf32>
    %c0_12 = arith.constant 0 : index
    %c0_13 = arith.constant 0 : index
    %19 = vector.load %arg3[%c0_12, %c0_13] : memref<16x16xf32, #tpu.memory_space<vmem>>, vector<16x16xf32>
    %20 = vector.extract_strided_slice %16 {offsets = [0, 0], sizes = [16, 8], strides = [1, 1]} : vector<16x32xf32> to vector<16x8xf32>
    %21 = vector.extract_strided_slice %17 {offsets = [0, 0], sizes = [16, 8], strides = [1, 1]} : vector<16x32xf32> to vector<16x8xf32>
    %22 = vector.extract_strided_slice %18 {offsets = [0, 0], sizes = [16, 8], strides = [1, 1]} : vector<16x32xf32> to vector<16x8xf32>
    %23 = tpu.transpose %21, [1, 0] : vector<16x8xf32> -> vector<8x16xf32>
    %cst_14 = arith.constant dense<0.000000e+00> : vector<16x16xf32>
    %24 = tpu.matmul %20, %23, %cst_14 {dimension_numbers = #tpu.dot_dimension_numbers<[1], [0], [0], [1], [0, 0, 1, 1], [], []>} : vector<16x8xf32>, vector<8x16xf32>, vector<16x16xf32> -> vector<16x16xf32>
    %25 = arith.addf %24, %19 : vector<16x16xf32>
    %cst_15 = arith.constant dense<0xFF800000> : vector<16xf32>
    %26 = vector.multi_reduction <maximumf>, %25, %cst_15 [1] : vector<16x16xf32> to vector<16xf32>
    %27 = vector.shape_cast %26 : vector<16xf32> to vector<16x1xf32>
    %28 = vector.broadcast %27 : vector<16x1xf32> to vector<16x16xf32>
    %29 = arith.subf %25, %28 : vector<16x16xf32>
    %30 = math.exp %29 : vector<16x16xf32>
    %cst_16 = arith.constant dense<0.000000e+00> : vector<16xf32>
    %31 = vector.multi_reduction <add>, %30, %cst_16 [1] : vector<16x16xf32> to vector<16xf32>
    %32 = vector.shape_cast %31 : vector<16xf32> to vector<16x1xf32>
    %33 = tpu.reciprocal %32 {approx = true} : vector<16x1xf32> -> vector<16x1xf32>
    %34 = vector.broadcast %33 : vector<16x1xf32> to vector<16x16xf32>
    %35 = arith.mulf %30, %34 : vector<16x16xf32>
    %cst_17 = arith.constant dense<0.000000e+00> : vector<16x8xf32>
    %36 = tpu.matmul %35, %22, %cst_17 {dimension_numbers = #tpu.dot_dimension_numbers<[1], [0], [0], [1], [0, 0, 1, 1], [], []>} : vector<16x16xf32>, vector<16x8xf32>, vector<16x8xf32> -> vector<16x8xf32>
    %37 = vector.extract_strided_slice %16 {offsets = [0, 8], sizes = [16, 8], strides = [1, 1]} : vector<16x32xf32> to vector<16x8xf32>
    %38 = vector.extract_strided_slice %17 {offsets = [0, 8], sizes = [16, 8], strides = [1, 1]} : vector<16x32xf32> to vector<16x8xf32>
    %39 = vector.extract_strided_slice %18 {offsets = [0, 8], sizes = [16, 8], strides = [1, 1]} : vector<16x32xf32> to vector<16x8xf32>
    %40 = tpu.transpose %38, [1, 0] : vector<16x8xf32> -> vector<8x16xf32>
    %cst_18 = arith.constant dense<0.000000e+00> : vector<16x16xf32>
    %41 = tpu.matmul %37, %40, %cst_18 {dimension_numbers = #tpu.dot_dimension_numbers<[1], [0], [0], [1], [0, 0, 1, 1], [], []>} : vector<16x8xf32>, vector<8x16xf32>, vector<16x16xf32> -> vector<16x16xf32>
    %42 = arith.addf %41, %19 : vector<16x16xf32>
    %cst_19 = arith.constant dense<0xFF800000> : vector<16xf32>
    %43 = vector.multi_reduction <maximumf>, %42, %cst_19 [1] : vector<16x16xf32> to vector<16xf32>
    %44 = vector.shape_cast %43 : vector<16xf32> to vector<16x1xf32>
    %45 = vector.broadcast %44 : vector<16x1xf32> to vector<16x16xf32>
    %46 = arith.subf %42, %45 : vector<16x16xf32>
    %47 = math.exp %46 : vector<16x16xf32>
    %cst_20 = arith.constant dense<0.000000e+00> : vector<16xf32>
    %48 = vector.multi_reduction <add>, %47, %cst_20 [1] : vector<16x16xf32> to vector<16xf32>
    %49 = vector.shape_cast %48 : vector<16xf32> to vector<16x1xf32>
    %50 = tpu.reciprocal %49 {approx = true} : vector<16x1xf32> -> vector<16x1xf32>
    %51 = vector.broadcast %50 : vector<16x1xf32> to vector<16x16xf32>
    %52 = arith.mulf %47, %51 : vector<16x16xf32>
    %cst_21 = arith.constant dense<0.000000e+00> : vector<16x8xf32>
    %53 = tpu.matmul %52, %39, %cst_21 {dimension_numbers = #tpu.dot_dimension_numbers<[1], [0], [0], [1], [0, 0, 1, 1], [], []>} : vector<16x16xf32>, vector<16x8xf32>, vector<16x8xf32> -> vector<16x8xf32>
    %54 = vector.extract_strided_slice %16 {offsets = [0, 16], sizes = [16, 8], strides = [1, 1]} : vector<16x32xf32> to vector<16x8xf32>
    %55 = vector.extract_strided_slice %17 {offsets = [0, 16], sizes = [16, 8], strides = [1, 1]} : vector<16x32xf32> to vector<16x8xf32>
    %56 = vector.extract_strided_slice %18 {offsets = [0, 16], sizes = [16, 8], strides = [1, 1]} : vector<16x32xf32> to vector<16x8xf32>
    %57 = tpu.transpose %55, [1, 0] : vector<16x8xf32> -> vector<8x16xf32>
    %cst_22 = arith.constant dense<0.000000e+00> : vector<16x16xf32>
    %58 = tpu.matmul %54, %57, %cst_22 {dimension_numbers = #tpu.dot_dimension_numbers<[1], [0], [0], [1], [0, 0, 1, 1], [], []>} : vector<16x8xf32>, vector<8x16xf32>, vector<16x16xf32> -> vector<16x16xf32>
    %59 = arith.addf %58, %19 : vector<16x16xf32>
    %cst_23 = arith.constant dense<0xFF800000> : vector<16xf32>
    %60 = vector.multi_reduction <maximumf>, %59, %cst_23 [1] : vector<16x16xf32> to vector<16xf32>
    %61 = vector.shape_cast %60 : vector<16xf32> to vector<16x1xf32>
    %62 = vector.broadcast %61 : vector<16x1xf32> to vector<16x16xf32>
    %63 = arith.subf %59, %62 : vector<16x16xf32>
    %64 = math.exp %63 : vector<16x16xf32>
    %cst_24 = arith.constant dense<0.000000e+00> : vector<16xf32>
    %65 = vector.multi_reduction <add>, %64, %cst_24 [1] : vector<16x16xf32> to vector<16xf32>
    %66 = vector.shape_cast %65 : vector<16xf32> to vector<16x1xf32>
    %67 = tpu.reciprocal %66 {approx = true} : vector<16x1xf32> -> vector<16x1xf32>
    %68 = vector.broadcast %67 : vector<16x1xf32> to vector<16x16xf32>
    %69 = arith.mulf %64, %68 : vector<16x16xf32>
    %cst_25 = arith.constant dense<0.000000e+00> : vector<16x8xf32>
    %70 = tpu.matmul %69, %56, %cst_25 {dimension_numbers = #tpu.dot_dimension_numbers<[1], [0], [0], [1], [0, 0, 1, 1], [], []>} : vector<16x16xf32>, vector<16x8xf32>, vector<16x8xf32> -> vector<16x8xf32>
    %71 = vector.extract_strided_slice %16 {offsets = [0, 24], sizes = [16, 8], strides = [1, 1]} : vector<16x32xf32> to vector<16x8xf32>
    %72 = vector.extract_strided_slice %17 {offsets = [0, 24], sizes = [16, 8], strides = [1, 1]} : vector<16x32xf32> to vector<16x8xf32>
    %73 = vector.extract_strided_slice %18 {offsets = [0, 24], sizes = [16, 8], strides = [1, 1]} : vector<16x32xf32> to vector<16x8xf32>
    %74 = tpu.transpose %72, [1, 0] : vector<16x8xf32> -> vector<8x16xf32>
    %cst_26 = arith.constant dense<0.000000e+00> : vector<16x16xf32>
    %75 = tpu.matmul %71, %74, %cst_26 {dimension_numbers = #tpu.dot_dimension_numbers<[1], [0], [0], [1], [0, 0, 1, 1], [], []>} : vector<16x8xf32>, vector<8x16xf32>, vector<16x16xf32> -> vector<16x16xf32>
    %76 = arith.addf %75, %19 : vector<16x16xf32>
    %cst_27 = arith.constant dense<0xFF800000> : vector<16xf32>
    %77 = vector.multi_reduction <maximumf>, %76, %cst_27 [1] : vector<16x16xf32> to vector<16xf32>
    %78 = vector.shape_cast %77 : vector<16xf32> to vector<16x1xf32>
    %79 = vector.broadcast %78 : vector<16x1xf32> to vector<16x16xf32>
    %80 = arith.subf %76, %79 : vector<16x16xf32>
    %81 = math.exp %80 : vector<16x16xf32>
    %cst_28 = arith.constant dense<0.000000e+00> : vector<16xf32>
    %82 = vector.multi_reduction <add>, %81, %cst_28 [1] : vector<16x16xf32> to vector<16xf32>
    %83 = vector.shape_cast %82 : vector<16xf32> to vector<16x1xf32>
    %84 = tpu.reciprocal %83 {approx = true} : vector<16x1xf32> -> vector<16x1xf32>
    %85 = vector.broadcast %84 : vector<16x1xf32> to vector<16x16xf32>
    %86 = arith.mulf %81, %85 : vector<16x16xf32>
    %cst_29 = arith.constant dense<0.000000e+00> : vector<16x8xf32>
    %87 = tpu.matmul %86, %73, %cst_29 {dimension_numbers = #tpu.dot_dimension_numbers<[1], [0], [0], [1], [0, 0, 1, 1], [], []>} : vector<16x16xf32>, vector<16x8xf32>, vector<16x8xf32> -> vector<16x8xf32>
    %88 = tpu.concatenate %36, %53, %70, %87 in 1 : vector<16x8xf32>, vector<16x8xf32>, vector<16x8xf32>, vector<16x8xf32> -> vector<16x32xf32>
    %c0_30 = arith.constant 0 : index
    %c0_31 = arith.constant 0 : index
    %89 = vector.load %arg6[%c0_30, %c0_31] : memref<32x32xf32, #tpu.memory_space<vmem>>, vector<32x32xf32>
    %cst_32 = arith.constant dense<0.000000e+00> : vector<16x32xf32>
    %90 = tpu.matmul %88, %89, %cst_32 {dimension_numbers = #tpu.dot_dimension_numbers<[1], [0], [0], [1], [0, 0, 1, 1], [], []>} : vector<16x32xf32>, vector<32x32xf32>, vector<16x32xf32> -> vector<16x32xf32>
    %c0_33 = arith.constant 0 : index
    %c0_34 = arith.constant 0 : index
    %91 = vector.load %arg7[%c0_33, %c0_34] : memref<1x32xf32, #tpu.memory_space<vmem>>, vector<1x32xf32>
    %92 = vector.broadcast %91 : vector<1x32xf32> to vector<16x32xf32>
    %93 = arith.addf %90, %92 : vector<16x32xf32>
    %94 = arith.addf %10, %93 : vector<16x32xf32>
    %c0_35 = arith.constant 0 : index
    %c0_36 = arith.constant 0 : index
    %95 = vector.load %arg8[%c0_35, %c0_36] : memref<1x32xf32, #tpu.memory_space<vmem>>, vector<1x32xf32>
    %c0_37 = arith.constant 0 : index
    %c0_38 = arith.constant 0 : index
    %96 = vector.load %arg9[%c0_37, %c0_38] : memref<1x32xf32, #tpu.memory_space<vmem>>, vector<1x32xf32>
    %cst_39 = arith.constant dense<0.000000e+00> : vector<16xf32>
    %97 = vector.multi_reduction <add>, %94, %cst_39 [1] : vector<16x32xf32> to vector<16xf32>
    %98 = vector.shape_cast %97 : vector<16xf32> to vector<16x1xf32>
    %cst_40 = arith.constant 3.200000e+01 : f32
    %99 = vector.broadcast %cst_40 : f32 to vector<16x1xf32>
    %100 = arith.divf %98, %99 : vector<16x1xf32>
    %101 = vector.broadcast %100 : vector<16x1xf32> to vector<16x32xf32>
    %102 = arith.subf %94, %101 : vector<16x32xf32>
    %103 = arith.mulf %102, %102 : vector<16x32xf32>
    %cst_41 = arith.constant dense<0.000000e+00> : vector<16xf32>
    %104 = vector.multi_reduction <add>, %103, %cst_41 [1] : vector<16x32xf32> to vector<16xf32>
    %105 = vector.shape_cast %104 : vector<16xf32> to vector<16x1xf32>
    %cst_42 = arith.constant 3.200000e+01 : f32
    %106 = vector.broadcast %cst_42 : f32 to vector<16x1xf32>
    %107 = arith.divf %105, %106 : vector<16x1xf32>
    %108 = vector.broadcast %100 : vector<16x1xf32> to vector<16x32xf32>
    %109 = arith.subf %94, %108 : vector<16x32xf32>
    %cst_43 = arith.constant 9.99999974E-6 : f32
    %110 = vector.broadcast %cst_43 : f32 to vector<16x1xf32>
    %111 = arith.addf %107, %110 : vector<16x1xf32>
    %112 = math.rsqrt %111 : vector<16x1xf32>
    %113 = vector.broadcast %112 : vector<16x1xf32> to vector<16x32xf32>
    %114 = arith.mulf %109, %113 : vector<16x32xf32>
    %115 = vector.broadcast %95 : vector<1x32xf32> to vector<16x32xf32>
    %116 = arith.mulf %114, %115 : vector<16x32xf32>
    %117 = vector.broadcast %96 : vector<1x32xf32> to vector<16x32xf32>
    %118 = arith.addf %116, %117 : vector<16x32xf32>
    %c0_44 = arith.constant 0 : index
    %c0_45 = arith.constant 0 : index
    %119 = vector.load %arg10[%c0_44, %c0_45] : memref<32x64xf32, #tpu.memory_space<vmem>>, vector<32x64xf32>
    %cst_46 = arith.constant dense<0.000000e+00> : vector<16x64xf32>
    %120 = tpu.matmul %118, %119, %cst_46 {dimension_numbers = #tpu.dot_dimension_numbers<[1], [0], [0], [1], [0, 0, 1, 1], [], []>} : vector<16x32xf32>, vector<32x64xf32>, vector<16x64xf32> -> vector<16x64xf32>
    %c0_47 = arith.constant 0 : index
    %c0_48 = arith.constant 0 : index
    %121 = vector.load %arg11[%c0_47, %c0_48] : memref<1x64xf32, #tpu.memory_space<vmem>>, vector<1x64xf32>
    %122 = vector.broadcast %121 : vector<1x64xf32> to vector<16x64xf32>
    %123 = arith.addf %120, %122 : vector<16x64xf32>
    %124 = arith.mulf %123, %123 : vector<16x64xf32>
    %125 = arith.mulf %123, %124 : vector<16x64xf32>
    %cst_49 = arith.constant 4.471500e-02 : f32
    %126 = vector.broadcast %cst_49 : f32 to vector<16x64xf32>
    %127 = arith.mulf %126, %125 : vector<16x64xf32>
    %128 = arith.addf %123, %127 : vector<16x64xf32>
    %cst_50 = arith.constant 0.797884583 : f32
    %129 = vector.broadcast %cst_50 : f32 to vector<16x64xf32>
    %130 = arith.mulf %129, %128 : vector<16x64xf32>
    %131 = math.tanh %130 : vector<16x64xf32>
    %cst_51 = arith.constant 1.000000e+00 : f32
    %132 = vector.broadcast %cst_51 : f32 to vector<16x64xf32>
    %133 = arith.addf %132, %131 : vector<16x64xf32>
    %cst_52 = arith.constant 5.000000e-01 : f32
    %134 = vector.broadcast %cst_52 : f32 to vector<16x64xf32>
    %135 = arith.mulf %134, %133 : vector<16x64xf32>
    %136 = arith.mulf %123, %135 : vector<16x64xf32>
    %c0_53 = arith.constant 0 : index
    %c0_54 = arith.constant 0 : index
    %137 = vector.load %arg12[%c0_53, %c0_54] : memref<64x32xf32, #tpu.memory_space<vmem>>, vector<64x32xf32>
    %cst_55 = arith.constant dense<0.000000e+00> : vector<16x32xf32>
    %138 = tpu.matmul %136, %137, %cst_55 {dimension_numbers = #tpu.dot_dimension_numbers<[1], [0], [0], [1], [0, 0, 1, 1], [], []>} : vector<16x64xf32>, vector<64x32xf32>, vector<16x32xf32> -> vector<16x32xf32>
    %c0_56 = arith.constant 0 : index
    %c0_57 = arith.constant 0 : index
    %139 = vector.load %arg13[%c0_56, %c0_57] : memref<1x32xf32, #tpu.memory_space<vmem>>, vector<1x32xf32>
    %140 = vector.broadcast %139 : vector<1x32xf32> to vector<16x32xf32>
    %141 = arith.addf %138, %140 : vector<16x32xf32>
    %142 = arith.addf %118, %141 : vector<16x32xf32>
    %c0_58 = arith.constant 0 : index
    %c0_59 = arith.constant 0 : index
    %143 = vector.load %arg14[%c0_58, %c0_59] : memref<1x32xf32, #tpu.memory_space<vmem>>, vector<1x32xf32>
    %c0_60 = arith.constant 0 : index
    %c0_61 = arith.constant 0 : index
    %144 = vector.load %arg15[%c0_60, %c0_61] : memref<1x32xf32, #tpu.memory_space<vmem>>, vector<1x32xf32>
    %cst_62 = arith.constant dense<0.000000e+00> : vector<16xf32>
    %145 = vector.multi_reduction <add>, %142, %cst_62 [1] : vector<16x32xf32> to vector<16xf32>
    %146 = vector.shape_cast %145 : vector<16xf32> to vector<16x1xf32>
    %cst_63 = arith.constant 3.200000e+01 : f32
    %147 = vector.broadcast %cst_63 : f32 to vector<16x1xf32>
    %148 = arith.divf %146, %147 : vector<16x1xf32>
    %149 = vector.broadcast %148 : vector<16x1xf32> to vector<16x32xf32>
    %150 = arith.subf %142, %149 : vector<16x32xf32>
    %151 = arith.mulf %150, %150 : vector<16x32xf32>
    %cst_64 = arith.constant dense<0.000000e+00> : vector<16xf32>
    %152 = vector.multi_reduction <add>, %151, %cst_64 [1] : vector<16x32xf32> to vector<16xf32>
    %153 = vector.shape_cast %152 : vector<16xf32> to vector<16x1xf32>
    %cst_65 = arith.constant 3.200000e+01 : f32
    %154 = vector.broadcast %cst_65 : f32 to vector<16x1xf32>
    %155 = arith.divf %153, %154 : vector<16x1xf32>
    %156 = vector.broadcast %148 : vector<16x1xf32> to vector<16x32xf32>
    %157 = arith.subf %142, %156 : vector<16x32xf32>
    %cst_66 = arith.constant 9.99999974E-6 : f32
    %158 = vector.broadcast %cst_66 : f32 to vector<16x1xf32>
    %159 = arith.addf %155, %158 : vector<16x1xf32>
    %160 = math.rsqrt %159 : vector<16x1xf32>
    %161 = vector.broadcast %160 : vector<16x1xf32> to vector<16x32xf32>
    %162 = arith.mulf %157, %161 : vector<16x32xf32>
    %163 = vector.broadcast %143 : vector<1x32xf32> to vector<16x32xf32>
    %164 = arith.mulf %162, %163 : vector<16x32xf32>
    %165 = vector.broadcast %144 : vector<1x32xf32> to vector<16x32xf32>
    %166 = arith.addf %164, %165 : vector<16x32xf32>
    %167 = vector.extract_strided_slice %166 {offsets = [0, 0], sizes = [8, 32], strides = [1, 1]} : vector<16x32xf32> to vector<8x32xf32>
    %168 = vector.extract_strided_slice %167 {offsets = [0, 0], sizes = [1, 32], strides = [1, 1]} : vector<8x32xf32> to vector<1x32xf32>
    %169 = vector.extract_strided_slice %167 {offsets = [1, 0], sizes = [1, 32], strides = [1, 1]} : vector<8x32xf32> to vector<1x32xf32>
    %170 = vector.extract_strided_slice %167 {offsets = [2, 0], sizes = [1, 32], strides = [1, 1]} : vector<8x32xf32> to vector<1x32xf32>
    %171 = vector.extract_strided_slice %167 {offsets = [3, 0], sizes = [1, 32], strides = [1, 1]} : vector<8x32xf32> to vector<1x32xf32>
    %172 = vector.extract_strided_slice %167 {offsets = [4, 0], sizes = [1, 32], strides = [1, 1]} : vector<8x32xf32> to vector<1x32xf32>
    %173 = vector.extract_strided_slice %167 {offsets = [5, 0], sizes = [1, 32], strides = [1, 1]} : vector<8x32xf32> to vector<1x32xf32>
    %174 = vector.extract_strided_slice %167 {offsets = [6, 0], sizes = [1, 32], strides = [1, 1]} : vector<8x32xf32> to vector<1x32xf32>
    %175 = vector.extract_strided_slice %167 {offsets = [7, 0], sizes = [1, 32], strides = [1, 1]} : vector<8x32xf32> to vector<1x32xf32>
    %176 = tpu.concatenate %168, %169, %170, %171, %172, %173, %174, %175 in 1 : vector<1x32xf32>, vector<1x32xf32>, vector<1x32xf32>, vector<1x32xf32>, vector<1x32xf32>, vector<1x32xf32>, vector<1x32xf32>, vector<1x32xf32> -> vector<1x256xf32>
    %177 = vector.extract_strided_slice %166 {offsets = [8, 0], sizes = [8, 32], strides = [1, 1]} : vector<16x32xf32> to vector<8x32xf32>
    %178 = vector.extract_strided_slice %177 {offsets = [0, 0], sizes = [1, 32], strides = [1, 1]} : vector<8x32xf32> to vector<1x32xf32>
    %179 = vector.extract_strided_slice %177 {offsets = [1, 0], sizes = [1, 32], strides = [1, 1]} : vector<8x32xf32> to vector<1x32xf32>
    %180 = vector.extract_strided_slice %177 {offsets = [2, 0], sizes = [1, 32], strides = [1, 1]} : vector<8x32xf32> to vector<1x32xf32>
    %181 = vector.extract_strided_slice %177 {offsets = [3, 0], sizes = [1, 32], strides = [1, 1]} : vector<8x32xf32> to vector<1x32xf32>
    %182 = vector.extract_strided_slice %177 {offsets = [4, 0], sizes = [1, 32], strides = [1, 1]} : vector<8x32xf32> to vector<1x32xf32>
    %183 = vector.extract_strided_slice %177 {offsets = [5, 0], sizes = [1, 32], strides = [1, 1]} : vector<8x32xf32> to vector<1x32xf32>
    %184 = vector.extract_strided_slice %177 {offsets = [6, 0], sizes = [1, 32], strides = [1, 1]} : vector<8x32xf32> to vector<1x32xf32>
    %185 = vector.extract_strided_slice %177 {offsets = [7, 0], sizes = [1, 32], strides = [1, 1]} : vector<8x32xf32> to vector<1x32xf32>
    %186 = tpu.concatenate %178, %179, %180, %181, %182, %183, %184, %185 in 1 : vector<1x32xf32>, vector<1x32xf32>, vector<1x32xf32>, vector<1x32xf32>, vector<1x32xf32>, vector<1x32xf32>, vector<1x32xf32>, vector<1x32xf32> -> vector<1x256xf32>
    %187 = tpu.concatenate %176, %186 in 0 : vector<1x256xf32>, vector<1x256xf32> -> vector<2x256xf32>
    %c0_67 = arith.constant 0 : index
    %c0_68 = arith.constant 0 : index
    %188 = vector.load %arg16[%c0_67, %c0_68] : memref<2x256xf32, #tpu.memory_space<vmem>>, vector<2x256xf32>
    tpu.vector_store %arg16[%c0_67, %c0_68], %187 {strides = array<i32>} : memref<2x256xf32, #tpu.memory_space<vmem>>, vector<2x256xf32>,
    return
  }
}

</mosaic_0001>

<llo_original>
// kernel: tpu_custom_call.1
$region0: #{tpu_custom_call.1}
  #allocation0 [shape = 'u32[]', space=smem, size = 0x4, offset = 0x4, fixed_abs, tag = 'smem constant byte address 0x4 - core index']
  #allocation1 [shape = 'u32[144,128]{1,0:T(1,128)}', space=vmem, size = 0x12000, scoped, tag = 'internal scratch']
  %s0 = inlined_call_operand.vmem [shape: s32[16,1], index: 0, kind: input, shape index: {}]
  %s1 = inlined_call_operand.vmem [shape: f32[64,32], index: 1, kind: input, shape index: {}]
  %s2 = inlined_call_operand.vmem [shape: f32[16,32], index: 2, kind: input, shape index: {}]
  %s3 = inlined_call_operand.vmem [shape: f32[16,16], index: 3, kind: input, shape index: {}]
  %s4 = inlined_call_operand.vmem [shape: f32[32,96], index: 4, kind: input, shape index: {}]
  %s5 = inlined_call_operand.vmem [shape: f32[1,96], index: 5, kind: input, shape index: {}]
  %s6 = inlined_call_operand.vmem [shape: f32[32,32], index: 6, kind: input, shape index: {}]
  %s7 = inlined_call_operand.vmem [shape: f32[1,32], index: 7, kind: input, shape index: {}]
  %s8 = inlined_call_operand.vmem [shape: f32[1,32], index: 8, kind: input, shape index: {}]
  %s9 = inlined_call_operand.vmem [shape: f32[1,32], index: 9, kind: input, shape index: {}]
  %s10 = inlined_call_operand.vmem [shape: f32[32,64], index: 10, kind: input, shape index: {}]
  %s11 = inlined_call_operand.vmem [shape: f32[1,64], index: 11, kind: input, shape index: {}]
  %s12 = inlined_call_operand.vmem [shape: f32[64,32], index: 12, kind: input, shape index: {}]
  %s13 = inlined_call_operand.vmem [shape: f32[1,32], index: 13, kind: input, shape index: {}]
  %s14 = inlined_call_operand.vmem [shape: f32[1,32], index: 14, kind: input, shape index: {}]
  %s15 = inlined_call_operand.vmem [shape: f32[1,32], index: 15, kind: input, shape index: {}]
  %s16 = inlined_call_operand.hbm [shape: f32[2,256], index: 16, kind: output, shape index: {}]
  %s17 = sld [smem:[#allocation0]]
  $region74: #{tpu_custom_call.1} parent=0
    _
  %s19 = ssub.s32 1, %s17
  %s20 = scalar_select 0, %s19, %s17
  $region1: #{tpu_custom_call.1} parent=0
    #allocation2 [shape = 'u8[2048]{0}', space=vmem, size = 0x800, scoped, tag = 'output window, operand 0, single buffered']
    #allocation3 [shape = 's32[1]{0}', space=sflag, size = 0x4, scoped, tag = 'scoped memory for tpu_custom_call.1']
    %21 = vsyncpa [#allocation3], 0
    // Predicated region
    $region2: #{tpu_custom_call.1} parent=1 // pred_check
      _
    $region3: #{tpu_custom_call.1} parent=1 // pred_check_branch
      %23 = sbr.rel (0) target = $region5
    $region4: #{tpu_custom_call.1} parent=1 // pred_region
      _
    $region5: #{tpu_custom_call.1} parent=1 // pred_fallthru
      _
    // Predicated region
    $region6: #{tpu_custom_call.1} parent=1 // pred_check
      _
    $region7: #{tpu_custom_call.1} parent=1 // pred_check_branch
      %25 = sbr.rel (0) target = $region9
    $region8: #{tpu_custom_call.1} parent=1 // pred_region
      _
    $region9: #{tpu_custom_call.1} parent=1 // pred_fallthru
      _
    // Predicated region
    $region10: #{tpu_custom_call.1} parent=1 // pred_check
      _
    $region11: #{tpu_custom_call.1} parent=1 // pred_check_branch
      %27 = sbr.rel (0) target = $region13
    $region12: #{tpu_custom_call.1} parent=1 // pred_region
      _
    $region13: #{tpu_custom_call.1} parent=1 // pred_fallthru
      _
    // Predicated region
    $region14: #{tpu_custom_call.1} parent=1 // pred_check
      _
    $region15: #{tpu_custom_call.1} parent=1 // pred_check_branch
      %29 = sbr.rel (0) target = $region17
    $region16: #{tpu_custom_call.1} parent=1 // pred_region
      _
    $region17: #{tpu_custom_call.1} parent=1 // pred_fallthru
      _
    // Predicated region
    $region18: #{tpu_custom_call.1} parent=1 // pred_check
      _
    $region19: #{tpu_custom_call.1} parent=1 // pred_check_branch
      %31 = sbr.rel (0) target = $region21
    $region20: #{tpu_custom_call.1} parent=1 // pred_region
      _
    $region21: #{tpu_custom_call.1} parent=1 // pred_fallthru
      _
    // Predicated region
    $region22: #{tpu_custom_call.1} parent=1 // pred_check
      _
    $region23: #{tpu_custom_call.1} parent=1 // pred_check_branch
      %33 = sbr.rel (0) target = $region25
    $region24: #{tpu_custom_call.1} parent=1 // pred_region
      _
    $region25: #{tpu_custom_call.1} parent=1 // pred_fallthru
      _
    // Predicated region
    $region26: #{tpu_custom_call.1} parent=1 // pred_check
      _
    $region27: #{tpu_custom_call.1} parent=1 // pred_check_branch
      %35 = sbr.rel (0) target = $region29
    $region28: #{tpu_custom_call.1} parent=1 // pred_region
      _
    $region29: #{tpu_custom_call.1} parent=1 // pred_fallthru
      _
    // Predicated region
    $region30: #{tpu_custom_call.1} parent=1 // pred_check
      _
    $region31: #{tpu_custom_call.1} parent=1 // pred_check_branch
      %37 = sbr.rel (0) target = $region33
    $region32: #{tpu_custom_call.1} parent=1 // pred_region
      _
    $region33: #{tpu_custom_call.1} parent=1 // pred_fallthru
      _
    // Predicated region
    $region34: #{tpu_custom_call.1} parent=1 // pred_check
      _
    $region35: #{tpu_custom_call.1} parent=1 // pred_check_branch
      %39 = sbr.rel (0) target = $region37
    $region36: #{tpu_custom_call.1} parent=1 // pred_region
      _
    $region37: #{tpu_custom_call.1} parent=1 // pred_fallthru
      _
    // Predicated region
    $region38: #{tpu_custom_call.1} parent=1 // pred_check
      _
    $region39: #{tpu_custom_call.1} parent=1 // pred_check_branch
      %41 = sbr.rel (0) target = $region41
    $region40: #{tpu_custom_call.1} parent=1 // pred_region
      _
    $region41: #{tpu_custom_call.1} parent=1 // pred_fallthru
      _
    // Predicated region
    $region42: #{tpu_custom_call.1} parent=1 // pred_check
      _
    $region43: #{tpu_custom_call.1} parent=1 // pred_check_branch
      %43 = sbr.rel (0) target = $region45
    $region44: #{tpu_custom_call.1} parent=1 // pred_region
      _
    $region45: #{tpu_custom_call.1} parent=1 // pred_fallthru
      _
    // Predicated region
    $region46: #{tpu_custom_call.1} parent=1 // pred_check
      _
    $region47: #{tpu_custom_call.1} parent=1 // pred_check_branch
      %45 = sbr.rel (0) target = $region49
    $region48: #{tpu_custom_call.1} parent=1 // pred_region
      _
    $region49: #{tpu_custom_call.1} parent=1 // pred_fallthru
      _
    // Predicated region
    $region50: #{tpu_custom_call.1} parent=1 // pred_check
      _
    $region51: #{tpu_custom_call.1} parent=1 // pred_check_branch
      %47 = sbr.rel (0) target = $region53
    $region52: #{tpu_custom_call.1} parent=1 // pred_region
      _
    $region53: #{tpu_custom_call.1} parent=1 // pred_fallthru
      _
    // Predicated region
    $region54: #{tpu_custom_call.1} parent=1 // pred_check
      _
    $region55: #{tpu_custom_call.1} parent=1 // pred_check_branch
      %49 = sbr.rel (0) target = $region57
    $region56: #{tpu_custom_call.1} parent=1 // pred_region
      _
    $region57: #{tpu_custom_call.1} parent=1 // pred_fallthru
      _
    // Predicated region
    $region58: #{tpu_custom_call.1} parent=1 // pred_check
      _
    $region59: #{tpu_custom_call.1} parent=1 // pred_check_branch
      %51 = sbr.rel (0) target = $region61
    $region60: #{tpu_custom_call.1} parent=1 // pred_region
      _
    $region61: #{tpu_custom_call.1} parent=1 // pred_fallthru
      _
    // Predicated region
    $region62: #{tpu_custom_call.1} parent=1 // pred_check
      _
    $region63: #{tpu_custom_call.1} parent=1 // pred_check_branch
      %53 = sbr.rel (0) target = $region65
    $region64: #{tpu_custom_call.1} parent=1 // pred_region
      _
    $region65: #{tpu_custom_call.1} parent=1 // pred_fallthru
      _
    %v54 = vld [vmem:[%s0] sm:$0xff]
    %v55 = vld [vmem:[%s0 + $0x8] sm:$0xff]
    %v56 = vlaneseq
    %v57 = vand.u32 %v56, 127
    %58 = vset.pattern.permute.xlu0 0
    %59 = vperm.xlu0 %58, %v54
    %v60 = vpop.permute.xlu0 %59
    %61 = vset.pattern.permute.xlu0 0
    %62 = vperm.xlu0 %61, %v55
    %v63 = vpop.permute.xlu0 %62
    %vm64 = vcmp.eq.s32.totalorder %v60, %v57
    %vm65 = vcmp.eq.s32.totalorder %v63, %v57
    %v66 = vsel %vm64, 1.0, 0.0
    %v67 = vsel %vm65, 1.0, 0.0
    %v68 = vld [vmem:[%s1] sm:$0xff]
    %v69 = vld [vmem:[%s1 + $0x8] sm:$0xff]
    %v70 = vld [vmem:[%s1 + $0x10] sm:$0xff]
    %v71 = vld [vmem:[%s1 + $0x18] sm:$0xff]
    %v72 = vld [vmem:[%s1 + $0x20] sm:$0xff]
    %v73 = vld [vmem:[%s1 + $0x28] sm:$0xff]
    %v74 = vld [vmem:[%s1 + $0x30] sm:$0xff]
    %v75 = vld [vmem:[%s1 + $0x38] sm:$0xff]
    %v76 = vld [vmem:[%s2] sm:$0xff]
    %v77 = vld [vmem:[%s2 + $0x8] sm:$0xff]
    %vm78 = vcmask 523264
    %v80 = vsel %vm78, %v66, 0
    %v83 = vsel %vm78, %v67, 0
    %85 = vmatprep.subr.mxu0 0.0
    %86 = vmatpush1.msra.mxu0 %v68
    %87 = vmatprep.subr.mxu0 0.0
    %88 = vmatpush1.msra.mxu0 %v69
    %89 = vmatprep.subr.mxu0 0.0
    %90 = vmatpush1.msra.mxu0 %v70
    %91 = vmatprep.subr.mxu0 0.0
    %92 = vmatpush1.msra.mxu0 %v71
    %93 = vmatprep.subr.mxu0 0.0
    %94 = vmatpush1.msra.mxu0 %v72
    %95 = vmatprep.subr.mxu0 0.0
    %96 = vmatpush1.msra.mxu0 %v73
    %97 = vmatprep.subr.mxu0 0.0
    %98 = vmatpush1.msra.mxu0 %v74
    %99 = vmatprep.subr.mxu0 0.0
    %100 = vmatpush1.msra.mxu0 %v75
    %101 = vmatprep.subr.mxu0 0.0
    %102 = vmatpush1.msra.mxu0 0.0
    %103 = vmatprep.subr.mxu0 0.0
    %104 = vmatpush1.msra.mxu0 0.0
    %105 = vmatprep.subr.mxu0 0.0
    %106 = vmatpush1.msra.mxu0 0.0
    %107 = vmatprep.subr.mxu0 0.0
    %108 = vmatpush1.msra.mxu0 0.0
    %109 = vmatprep.subr.mxu0 0.0
    %110 = vmatpush1.msra.mxu0 0.0
    %111 = vmatprep.subr.mxu0 0.0
    %112 = vmatpush1.msra.mxu0 0.0
    %113 = vmatprep.subr.mxu0 0.0
    %114 = vmatpush1.msra.mxu0 0.0
    %115 = vmatprep.subr.mxu0 0.0
    %116 = vmatpush1.msra.mxu0 0.0
    %117 = vmatprep.subr.mxu0 0.0
    %118 = vmatpush1.msra.mxu0 0.0
    %119 = vmatprep.subr.mxu0 0.0
    %120 = vmatpush1.msra.mxu0 0.0
    %121 = vmatprep.subr.mxu0 0.0
    %122 = vmatpush1.msra.mxu0 0.0
    %123 = vmatprep.subr.mxu0 0.0
    %124 = vmatpush1.msra.mxu0 0.0
    %125 = vmatprep.subr.mxu0 0.0
    %126 = vmatpush1.msra.mxu0 0.0
    %127 = vmatprep.subr.mxu0 0.0
    %128 = vmatpush1.msra.mxu0 0.0
    %129 = vmatprep.subr.mxu0 0.0
    %130 = vmatpush1.msra.mxu0 0.0
    %131 = vmatprep.subr.mxu0 0.0
    %132 = vmatpush1.msra.mxu0 0.0
    %133 = vmatprep.subr.mxu0 0.0
    %134 = vmatpush1.msra.mxu0 0.0
    %135 = vmatprep.subr.mxu0 0.0
    %136 = vmatpush1.msra.mxu0 0.0
    %137 = vmatprep.subr.mxu0 0.0
    %138 = vmatpush1.msra.mxu0 0.0
    %139 = vmatprep.subr.mxu0 0.0
    %140 = vmatpush1.msra.mxu0 0.0
    %141 = vmatprep.subr.mxu0 0.0
    %142 = vmatpush1.msra.mxu0 0.0
    %143 = vmatprep.subr.mxu0 0.0
    %144 = vmatpush1.msra.mxu0 0.0
    %145 = vmatprep.subr.mxu0 0.0
    %146 = vmatpush1.msra.mxu0 0.0
    %147 = vmatprep.subr.mxu0 0.0
    %148 = vmatpush1.msra.mxu0 0.0
    %149 = vmatprep.mubr.f32.mxu0 0.0
    %150 = vmatmul.mubr.f32.gmra.mrb[0].mxu0 %v80
    %v151 = vpop.f32.mrb[0].mxu0
    %v152 = vadd.f32 %v76, %v151
    %v153 = vpop.f32.mrb[0].mxu0
    %154 = vmatprep.mubr.f32.mxu0 0.0
    %155 = vmatmul.mubr.f32.gmra.mrb[0].mxu0 %v83
    %v156 = vpop.f32.mrb[0].mxu0
    %v157 = vadd.f32 %v77, %v156
    %v158 = vpop.f32.mrb[0].mxu0
    %159 = vdwg.mxu0
    %v160 = vld [vmem:[%s4] sm:$0xff]
    %v161 = vld [vmem:[%s4 + $0x8] sm:$0xff]
    %v162 = vld [vmem:[%s4 + $0x10] sm:$0xff]
    %v163 = vld [vmem:[%s4 + $0x18] sm:$0xff]
    %v164 = vld [vmem:[%s5] sm:$0x1]
    %v166 = vlaneseq
    %v167 = vshrl.u32 %v166, 7
    %v168 = vsub.s32 0, %v167
    %v169 = vrot.slane %v164, %v168
    %vm171 = vcmask 261120
    %v173 = vsel %vm171, %v152, 0
    %v176 = vsel %vm171, %v157, 0
    %178 = vmatprep.subr.mxu0 0.0
    %179 = vmatpush1.msra.mxu0 %v160
    %180 = vmatprep.subr.mxu0 0.0
    %181 = vmatpush1.msra.mxu0 %v161
    %182 = vmatprep.subr.mxu0 0.0
    %183 = vmatpush1.msra.mxu0 %v162
    %184 = vmatprep.subr.mxu0 0.0
    %185 = vmatpush1.msra.mxu0 %v163
    %186 = vmatprep.subr.mxu0 0.0
    %187 = vmatpush1.msra.mxu0 0.0
    %188 = vmatprep.subr.mxu0 0.0
    %189 = vmatpush1.msra.mxu0 0.0
    %190 = vmatprep.subr.mxu0 0.0
    %191 = vmatpush1.msra.mxu0 0.0
    %192 = vmatprep.subr.mxu0 0.0
    %193 = vmatpush1.msra.mxu0 0.0
    %194 = vmatprep.subr.mxu0 0.0
    %195 = vmatpush1.msra.mxu0 0.0
    %196 = vmatprep.subr.mxu0 0.0
    %197 = vmatpush1.msra.mxu0 0.0
    %198 = vmatprep.subr.mxu0 0.0
    %199 = vmatpush1.msra.mxu0 0.0
    %200 = vmatprep.subr.mxu0 0.0
    %201 = vmatpush1.msra.mxu0 0.0
    %202 = vmatprep.subr.mxu0 0.0
    %203 = vmatpush1.msra.mxu0 0.0
    %204 = vmatprep.subr.mxu0 0.0
    %205 = vmatpush1.msra.mxu0 0.0
    %206 = vmatprep.subr.mxu0 0.0
    %207 = vmatpush1.msra.mxu0 0.0
    %208 = vmatprep.subr.mxu0 0.0
    %209 = vmatpush1.msra.mxu0 0.0
    %210 = vmatprep.subr.mxu0 0.0
    %211 = vmatpush1.msra.mxu0 0.0
    %212 = vmatprep.subr.mxu0 0.0
    %213 = vmatpush1.msra.mxu0 0.0
    %214 = vmatprep.subr.mxu0 0.0
    %215 = vmatpush1.msra.mxu0 0.0
    %216 = vmatprep.subr.mxu0 0.0
    %217 = vmatpush1.msra.mxu0 0.0
    %218 = vmatprep.subr.mxu0 0.0
    %219 = vmatpush1.msra.mxu0 0.0
    %220 = vmatprep.subr.mxu0 0.0
    %221 = vmatpush1.msra.mxu0 0.0
    %222 = vmatprep.subr.mxu0 0.0
    %223 = vmatpush1.msra.mxu0 0.0
    %224 = vmatprep.subr.mxu0 0.0
    %225 = vmatpush1.msra.mxu0 0.0
    %226 = vmatprep.subr.mxu0 0.0
    %227 = vmatpush1.msra.mxu0 0.0
    %228 = vmatprep.subr.mxu0 0.0
    %229 = vmatpush1.msra.mxu0 0.0
    %230 = vmatprep.subr.mxu0 0.0
    %231 = vmatpush1.msra.mxu0 0.0
    %232 = vmatprep.subr.mxu0 0.0
    %233 = vmatpush1.msra.mxu0 0.0
    %234 = vmatprep.subr.mxu0 0.0
    %235 = vmatpush1.msra.mxu0 0.0
    %236 = vmatprep.subr.mxu0 0.0
    %237 = vmatpush1.msra.mxu0 0.0
    %238 = vmatprep.subr.mxu0 0.0
    %239 = vmatpush1.msra.mxu0 0.0
    %240 = vmatprep.subr.mxu0 0.0
    %241 = vmatpush1.msra.mxu0 0.0
    %242 = vmatprep.mubr.f32.mxu0 0.0
    %243 = vmatmul.mubr.f32.gmra.mrb[0].mxu0 %v173
    %v244 = vpop.f32.mrb[0].mxu0
    %v245 = vadd.f32 %v169, %v244
    %v246 = vpop.f32.mrb[0].mxu0
    %247 = vmatprep.mubr.f32.mxu0 0.0
    %248 = vmatmul.mubr.f32.gmra.mrb[0].mxu0 %v176
    %v249 = vpop.f32.mrb[0].mxu0
    %v250 = vadd.f32 %v169, %v249
    %v251 = vpop.f32.mrb[0].mxu0
    %252 = vdwg.mxu0
    %v253 = vld [vmem:[%s3] sm:$0xff]
    %v254 = vld [vmem:[%s3 + $0x8] sm:$0xff]
    %257 = vrot.lane.b32.xlu0 %v245, 96
    %v258 = vpop.permute.xlu0 %257
    %259 = vrot.lane.b32.xlu0 %v250, 96
    %v260 = vpop.permute.xlu0 %259
    %vm261 = vcmask 64512
    %v262 = vsel %vm261, %v245, 0
    %v264 = vsel %vm261, %v250, 0
    %v266 = vsel %vm261, %v258, 0
    %v268 = vsel %vm261, %v260, 0
    %270 = vmatprep.subr.mxu0 0.0
    %271 = vmatpush1.xpose.msra.mxu0 %v266
    %272 = vmatprep.subr.mxu0 0.0
    %273 = vmatpush1.xpose.msra.mxu0 %v268
    %274 = vmatprep.subr.mxu0 0.0
    %275 = vmatpush1.xpose.msra.mxu0 0.0
    %276 = vmatprep.subr.mxu0 0.0
    %277 = vmatpush1.xpose.msra.mxu0 0.0
    %278 = vmatprep.subr.mxu0 0.0
    %279 = vmatpush1.xpose.msra.mxu0 0.0
    %280 = vmatprep.subr.mxu0 0.0
    %281 = vmatpush1.xpose.msra.mxu0 0.0
    %282 = vmatprep.subr.mxu0 0.0
    %283 = vmatpush1.xpose.msra.mxu0 0.0
    %284 = vmatprep.subr.mxu0 0.0
    %285 = vmatpush1.xpose.msra.mxu0 0.0
    %286 = vmatprep.subr.mxu0 0.0
    %287 = vmatpush1.xpose.msra.mxu0 0.0
    %288 = vmatprep.subr.mxu0 0.0
    %289 = vmatpush1.xpose.msra.mxu0 0.0
    %290 = vmatprep.subr.mxu0 0.0
    %291 = vmatpush1.xpose.msra.mxu0 0.0
    %292 = vmatprep.subr.mxu0 0.0
    %293 = vmatpush1.xpose.msra.mxu0 0.0
    %294 = vmatprep.subr.mxu0 0.0
    %295 = vmatpush1.xpose.msra.mxu0 0.0
    %296 = vmatprep.subr.mxu0 0.0
    %297 = vmatpush1.xpose.msra.mxu0 0.0
    %298 = vmatprep.subr.mxu0 0.0
    %299 = vmatpush1.xpose.msra.mxu0 0.0
    %300 = vmatprep.subr.mxu0 0.0
    %301 = vmatpush1.xpose.msra.mxu0 0.0
    %302 = vmatprep.subr.mxu0 0.0
    %303 = vmatpush1.xpose.msra.mxu0 0.0
    %304 = vmatprep.subr.mxu0 0.0
    %305 = vmatpush1.xpose.msra.mxu0 0.0
    %306 = vmatprep.subr.mxu0 0.0
    %307 = vmatpush1.xpose.msra.mxu0 0.0
    %308 = vmatprep.subr.mxu0 0.0
    %309 = vmatpush1.xpose.msra.mxu0 0.0
    %310 = vmatprep.subr.mxu0 0.0
    %311 = vmatpush1.xpose.msra.mxu0 0.0
    %312 = vmatprep.subr.mxu0 0.0
    %313 = vmatpush1.xpose.msra.mxu0 0.0
    %314 = vmatprep.subr.mxu0 0.0
    %315 = vmatpush1.xpose.msra.mxu0 0.0
    %316 = vmatprep.subr.mxu0 0.0
    %317 = vmatpush1.xpose.msra.mxu0 0.0
    %318 = vmatprep.subr.mxu0 0.0
    %319 = vmatpush1.xpose.msra.mxu0 0.0
    %320 = vmatprep.subr.mxu0 0.0
    %321 = vmatpush1.xpose.msra.mxu0 0.0
    %322 = vmatprep.subr.mxu0 0.0
    %323 = vmatpush1.xpose.msra.mxu0 0.0
    %324 = vmatprep.subr.mxu0 0.0
    %325 = vmatpush1.xpose.msra.mxu0 0.0
    %326 = vmatprep.subr.mxu0 0.0
    %327 = vmatpush1.xpose.msra.mxu0 0.0
    %328 = vmatprep.subr.mxu0 0.0
    %329 = vmatpush1.xpose.msra.mxu0 0.0
    %330 = vmatprep.subr.mxu0 0.0
    %331 = vmatpush1.xpose.msra.mxu0 0.0
    %332 = vmatprep.subr.mxu0 0.0
    %333 = vmatpush1.xpose.msra.mxu0 0.0
    %334 = vmatprep.mubr.f32.mxu0 0.0
    %335 = vmatmul.mubr.f32.gmra.mrb[0].mxu0 %v262
    %v336 = vpop.f32.mrb[0].mxu0
    %v337 = vadd.f32 %v253, %v336
    %v338 = vpop.f32.mrb[0].mxu0
    %339 = vmatprep.mubr.f32.mxu0 0.0
    %340 = vmatmul.mubr.f32.gmra.mrb[0].mxu0 %v264
    %v341 = vpop.f32.mrb[0].mxu0
    %v342 = vadd.f32 %v254, %v341
    %v343 = vpop.f32.mrb[0].mxu0
    %344 = vdwg.mxu0
    %vm345 = vcmask 130048
    %v346 = vsel %vm345, %v337, -inf
    %347 = vmax.xlane.f32.xlu0 %v346
    %v348 = vpop.xlane.xlu0 %347
    %v349 = vsel %vm345, %v342, -inf
    %350 = vmax.xlane.f32.xlu0 %v349
    %v351 = vpop.xlane.xlu0 %350
    %v352 = vsub.f32 %v337, %v348
    %v353 = vsub.f32 %v342, %v351
    %v354 = vmul.f32 %v352, 1.442695
    %v355 = vpow.pop %v354
    %v356 = vmul.f32 %v353, 1.442695
    %v357 = vpow.pop %v356
    %v358 = vsel %vm345, %v355, 0.0
    %359 = vadd.xlane.f32.xlu0 %v358
    %v360 = vpop.xlane.xlu0 %359
    %v361 = vsel %vm345, %v357, 0.0
    %362 = vadd.xlane.f32.xlu0 %v361
    %v363 = vpop.xlane.xlu0 %362
    %v364 = vrcp.pop %v360
    %v365 = vrcp.pop %v363
    %v366 = vmul.f32 %v355, %v364
    %v367 = vmul.f32 %v357, %v365
    %368 = vrot.lane.b32.xlu0 %v245, 64
    %v369 = vpop.permute.xlu0 %368
    %370 = vrot.lane.b32.xlu0 %v250, 64
    %v371 = vpop.permute.xlu0 %370
    %v375 = vsel %vm345, %v366, 0
    %v378 = vsel %vm345, %v367, 0
    %380 = vmatprep.subr.mxu0 0.0
    %381 = vmatpush1.msra.mxu0 %v369
    %382 = vmatprep.subr.mxu0 0.0
    %383 = vmatpush1.msra.mxu0 %v371
    %384 = vmatprep.subr.mxu0 0.0
    %385 = vmatpush1.msra.mxu0 0.0
    %386 = vmatprep.subr.mxu0 0.0
    %387 = vmatpush1.msra.mxu0 0.0
    %388 = vmatprep.subr.mxu0 0.0
    %389 = vmatpush1.msra.mxu0 0.0
    %390 = vmatprep.subr.mxu0 0.0
    %391 = vmatpush1.msra.mxu0 0.0
    %392 = vmatprep.subr.mxu0 0.0
    %393 = vmatpush1.msra.mxu0 0.0
    %394 = vmatprep.subr.mxu0 0.0
    %395 = vmatpush1.msra.mxu0 0.0
    %396 = vmatprep.subr.mxu0 0.0
    %397 = vmatpush1.msra.mxu0 0.0
    %398 = vmatprep.subr.mxu0 0.0
    %399 = vmatpush1.msra.mxu0 0.0
    %400 = vmatprep.subr.mxu0 0.0
    %401 = vmatpush1.msra.mxu0 0.0
    %402 = vmatprep.subr.mxu0 0.0
    %403 = vmatpush1.msra.mxu0 0.0
    %404 = vmatprep.subr.mxu0 0.0
    %405 = vmatpush1.msra.mxu0 0.0
    %406 = vmatprep.subr.mxu0 0.0
    %407 = vmatpush1.msra.mxu0 0.0
    %408 = vmatprep.subr.mxu0 0.0
    %409 = vmatpush1.msra.mxu0 0.0
    %410 = vmatprep.subr.mxu0 0.0
    %411 = vmatpush1.msra.mxu0 0.0
    %412 = vmatprep.subr.mxu0 0.0
    %413 = vmatpush1.msra.mxu0 0.0
    %414 = vmatprep.subr.mxu0 0.0
    %415 = vmatpush1.msra.mxu0 0.0
    %416 = vmatprep.subr.mxu0 0.0
    %417 = vmatpush1.msra.mxu0 0.0
    %418 = vmatprep.subr.mxu0 0.0
    %419 = vmatpush1.msra.mxu0 0.0
    %420 = vmatprep.subr.mxu0 0.0
    %421 = vmatpush1.msra.mxu0 0.0
    %422 = vmatprep.subr.mxu0 0.0
    %423 = vmatpush1.msra.mxu0 0.0
    %424 = vmatprep.subr.mxu0 0.0
    %425 = vmatpush1.msra.mxu0 0.0
    %426 = vmatprep.subr.mxu0 0.0
    %427 = vmatpush1.msra.mxu0 0.0
    %428 = vmatprep.subr.mxu0 0.0
    %429 = vmatpush1.msra.mxu0 0.0
    %430 = vmatprep.subr.mxu0 0.0
    %431 = vmatpush1.msra.mxu0 0.0
    %432 = vmatprep.subr.mxu0 0.0
    %433 = vmatpush1.msra.mxu0 0.0
    %434 = vmatprep.subr.mxu0 0.0
    %435 = vmatpush1.msra.mxu0 0.0
    %436 = vmatprep.subr.mxu0 0.0
    %437 = vmatpush1.msra.mxu0 0.0
    %438 = vmatprep.subr.mxu0 0.0
    %439 = vmatpush1.msra.mxu0 0.0
    %440 = vmatprep.subr.mxu0 0.0
    %441 = vmatpush1.msra.mxu0 0.0
    %442 = vmatprep.subr.mxu0 0.0
    %443 = vmatpush1.msra.mxu0 0.0
    %444 = vmatprep.mubr.f32.mxu0 0.0
    %445 = vmatmul.mubr.f32.gmra.mrb[0].mxu0 %v375
    %v446 = vpop.f32.mrb[0].mxu0
    %v447 = vadd.f32 0.0, %v446
    %v448 = vpop.f32.mrb[0].mxu0
    %449 = vmatprep.mubr.f32.mxu0 0.0
    %450 = vmatmul.mubr.f32.gmra.mrb[0].mxu0 %v378
    %v451 = vpop.f32.mrb[0].mxu0
    %v452 = vadd.f32 0.0, %v451
    %v453 = vpop.f32.mrb[0].mxu0
    %454 = vdwg.mxu0
    %455 = vrot.lane.b32.xlu0 %v245, 120
    %v456 = vpop.permute.xlu0 %455
    %457 = vrot.lane.b32.xlu0 %v250, 120
    %v458 = vpop.permute.xlu0 %457
    %459 = vrot.lane.b32.xlu0 %v245, 88
    %v460 = vpop.permute.xlu0 %459
    %461 = vrot.lane.b32.xlu0 %v250, 88
    %v462 = vpop.permute.xlu0 %461
    %v463 = vsel %vm261, %v456, 0
    %v465 = vsel %vm261, %v458, 0
    %v467 = vsel %vm261, %v460, 0
    %v469 = vsel %vm261, %v462, 0
    %471 = vmatprep.subr.mxu0 0.0
    %472 = vmatpush1.xpose.msra.mxu0 %v467
    %473 = vmatprep.subr.mxu0 0.0
    %474 = vmatpush1.xpose.msra.mxu0 %v469
    %475 = vmatprep.subr.mxu0 0.0
    %476 = vmatpush1.xpose.msra.mxu0 0.0
    %477 = vmatprep.subr.mxu0 0.0
    %478 = vmatpush1.xpose.msra.mxu0 0.0
    %479 = vmatprep.subr.mxu0 0.0
    %480 = vmatpush1.xpose.msra.mxu0 0.0
    %481 = vmatprep.subr.mxu0 0.0
    %482 = vmatpush1.xpose.msra.mxu0 0.0
    %483 = vmatprep.subr.mxu0 0.0
    %484 = vmatpush1.xpose.msra.mxu0 0.0
    %485 = vmatprep.subr.mxu0 0.0
    %486 = vmatpush1.xpose.msra.mxu0 0.0
    %487 = vmatprep.subr.mxu0 0.0
    %488 = vmatpush1.xpose.msra.mxu0 0.0
    %489 = vmatprep.subr.mxu0 0.0
    %490 = vmatpush1.xpose.msra.mxu0 0.0
    %491 = vmatprep.subr.mxu0 0.0
    %492 = vmatpush1.xpose.msra.mxu0 0.0
    %493 = vmatprep.subr.mxu0 0.0
    %494 = vmatpush1.xpose.msra.mxu0 0.0
    %495 = vmatprep.subr.mxu0 0.0
    %496 = vmatpush1.xpose.msra.mxu0 0.0
    %497 = vmatprep.subr.mxu0 0.0
    %498 = vmatpush1.xpose.msra.mxu0 0.0
    %499 = vmatprep.subr.mxu0 0.0
    %500 = vmatpush1.xpose.msra.mxu0 0.0
    %501 = vmatprep.subr.mxu0 0.0
    %502 = vmatpush1.xpose.msra.mxu0 0.0
    %503 = vmatprep.subr.mxu0 0.0
    %504 = vmatpush1.xpose.msra.mxu0 0.0
    %505 = vmatprep.subr.mxu0 0.0
    %506 = vmatpush1.xpose.msra.mxu0 0.0
    %507 = vmatprep.subr.mxu0 0.0
    %508 = vmatpush1.xpose.msra.mxu0 0.0
    %509 = vmatprep.subr.mxu0 0.0
    %510 = vmatpush1.xpose.msra.mxu0 0.0
    %511 = vmatprep.subr.mxu0 0.0
    %512 = vmatpush1.xpose.msra.mxu0 0.0
    %513 = vmatprep.subr.mxu0 0.0
    %514 = vmatpush1.xpose.msra.mxu0 0.0
    %515 = vmatprep.subr.mxu0 0.0
    %516 = vmatpush1.xpose.msra.mxu0 0.0
    %517 = vmatprep.subr.mxu0 0.0
    %518 = vmatpush1.xpose.msra.mxu0 0.0
    %519 = vmatprep.subr.mxu0 0.0
    %520 = vmatpush1.xpose.msra.mxu0 0.0
    %521 = vmatprep.subr.mxu0 0.0
    %522 = vmatpush1.xpose.msra.mxu0 0.0
    %523 = vmatprep.subr.mxu0 0.0
    %524 = vmatpush1.xpose.msra.mxu0 0.0
    %525 = vmatprep.subr.mxu0 0.0
    %526 = vmatpush1.xpose.msra.mxu0 0.0
    %527 = vmatprep.subr.mxu0 0.0
    %528 = vmatpush1.xpose.msra.mxu0 0.0
    %529 = vmatprep.subr.mxu0 0.0
    %530 = vmatpush1.xpose.msra.mxu0 0.0
    %531 = vmatprep.subr.mxu0 0.0
    %532 = vmatpush1.xpose.msra.mxu0 0.0
    %533 = vmatprep.subr.mxu0 0.0
    %534 = vmatpush1.xpose.msra.mxu0 0.0
    %535 = vmatprep.mubr.f32.mxu0 0.0
    %536 = vmatmul.mubr.f32.gmra.mrb[0].mxu0 %v463
    %v537 = vpop.f32.mrb[0].mxu0
    %v538 = vadd.f32 %v253, %v537
    %v539 = vpop.f32.mrb[0].mxu0
    %540 = vmatprep.mubr.f32.mxu0 0.0
    %541 = vmatmul.mubr.f32.gmra.mrb[0].mxu0 %v465
    %v542 = vpop.f32.mrb[0].mxu0
    %v543 = vadd.f32 %v254, %v542
    %v544 = vpop.f32.mrb[0].mxu0
    %545 = vdwg.mxu0
    %v546 = vsel %vm345, %v538, -inf
    %547 = vmax.xlane.f32.xlu0 %v546
    %v548 = vpop.xlane.xlu0 %547
    %v549 = vsel %vm345, %v543, -inf
    %550 = vmax.xlane.f32.xlu0 %v549
    %v551 = vpop.xlane.xlu0 %550
    %v552 = vsub.f32 %v538, %v548
    %v553 = vsub.f32 %v543, %v551
    %v554 = vmul.f32 %v552, 1.442695
    %v555 = vpow.pop %v554
    %v556 = vmul.f32 %v553, 1.442695
    %v557 = vpow.pop %v556
    %v558 = vsel %vm345, %v555, 0.0
    %559 = vadd.xlane.f32.xlu0 %v558
    %v560 = vpop.xlane.xlu0 %559
    %v561 = vsel %vm345, %v557, 0.0
    %562 = vadd.xlane.f32.xlu0 %v561
    %v563 = vpop.xlane.xlu0 %562
    %v564 = vrcp.pop %v560
    %v565 = vrcp.pop %v563
    %v566 = vmul.f32 %v555, %v564
    %v567 = vmul.f32 %v557, %v565
    %568 = vrot.lane.b32.xlu0 %v245, 56
    %v569 = vpop.permute.xlu0 %568
    %570 = vrot.lane.b32.xlu0 %v250, 56
    %v571 = vpop.permute.xlu0 %570
    %v575 = vsel %vm345, %v566, 0
    %v578 = vsel %vm345, %v567, 0
    %580 = vmatprep.subr.mxu0 0.0
    %581 = vmatpush1.msra.mxu0 %v569
    %582 = vmatprep.subr.mxu0 0.0
    %583 = vmatpush1.msra.mxu0 %v571
    %584 = vmatprep.subr.mxu0 0.0
    %585 = vmatpush1.msra.mxu0 0.0
    %586 = vmatprep.subr.mxu0 0.0
    %587 = vmatpush1.msra.mxu0 0.0
    %588 = vmatprep.subr.mxu0 0.0
    %589 = vmatpush1.msra.mxu0 0.0
    %590 = vmatprep.subr.mxu0 0.0
    %591 = vmatpush1.msra.mxu0 0.0
    %592 = vmatprep.subr.mxu0 0.0
    %593 = vmatpush1.msra.mxu0 0.0
    %594 = vmatprep.subr.mxu0 0.0
    %595 = vmatpush1.msra.mxu0 0.0
    %596 = vmatprep.subr.mxu0 0.0
    %597 = vmatpush1.msra.mxu0 0.0
    %598 = vmatprep.subr.mxu0 0.0
    %599 = vmatpush1.msra.mxu0 0.0
    %600 = vmatprep.subr.mxu0 0.0
    %601 = vmatpush1.msra.mxu0 0.0
    %602 = vmatprep.subr.mxu0 0.0
    %603 = vmatpush1.msra.mxu0 0.0
    %604 = vmatprep.subr.mxu0 0.0
    %605 = vmatpush1.msra.mxu0 0.0
    %606 = vmatprep.subr.mxu0 0.0
    %607 = vmatpush1.msra.mxu0 0.0
    %608 = vmatprep.subr.mxu0 0.0
    %609 = vmatpush1.msra.mxu0 0.0
    %610 = vmatprep.subr.mxu0 0.0
    %611 = vmatpush1.msra.mxu0 0.0
    %612 = vmatprep.subr.mxu0 0.0
    %613 = vmatpush1.msra.mxu0 0.0
    %614 = vmatprep.subr.mxu0 0.0
    %615 = vmatpush1.msra.mxu0 0.0
    %616 = vmatprep.subr.mxu0 0.0
    %617 = vmatpush1.msra.mxu0 0.0
    %618 = vmatprep.subr.mxu0 0.0
    %619 = vmatpush1.msra.mxu0 0.0
    %620 = vmatprep.subr.mxu0 0.0
    %621 = vmatpush1.msra.mxu0 0.0
    %622 = vmatprep.subr.mxu0 0.0
    %623 = vmatpush1.msra.mxu0 0.0
    %624 = vmatprep.subr.mxu0 0.0
    %625 = vmatpush1.msra.mxu0 0.0
    %626 = vmatprep.subr.mxu0 0.0
    %627 = vmatpush1.msra.mxu0 0.0
    %628 = vmatprep.subr.mxu0 0.0
    %629 = vmatpush1.msra.mxu0 0.0
    %630 = vmatprep.subr.mxu0 0.0
    %631 = vmatpush1.msra.mxu0 0.0
    %632 = vmatprep.subr.mxu0 0.0
    %633 = vmatpush1.msra.mxu0 0.0
    %634 = vmatprep.subr.mxu0 0.0
    %635 = vmatpush1.msra.mxu0 0.0
    %636 = vmatprep.subr.mxu0 0.0
    %637 = vmatpush1.msra.mxu0 0.0
    %638 = vmatprep.subr.mxu0 0.0
    %639 = vmatpush1.msra.mxu0 0.0
    %640 = vmatprep.subr.mxu0 0.0
    %641 = vmatpush1.msra.mxu0 0.0
    %642 = vmatprep.subr.mxu0 0.0
    %643 = vmatpush1.msra.mxu0 0.0
    %644 = vmatprep.mubr.f32.mxu0 0.0
    %645 = vmatmul.mubr.f32.gmra.mrb[0].mxu0 %v575
    %v646 = vpop.f32.mrb[0].mxu0
    %v647 = vadd.f32 0.0, %v646
    %v648 = vpop.f32.mrb[0].mxu0
    %649 = vmatprep.mubr.f32.mxu0 0.0
    %650 = vmatmul.mubr.f32.gmra.mrb[0].mxu0 %v578
    %v651 = vpop.f32.mrb[0].mxu0
    %v652 = vadd.f32 0.0, %v651
    %v653 = vpop.f32.mrb[0].mxu0
    %654 = vdwg.mxu0
    %655 = vrot.lane.b32.xlu0 %v245, 112
    %v656 = vpop.permute.xlu0 %655
    %657 = vrot.lane.b32.xlu0 %v250, 112
    %v658 = vpop.permute.xlu0 %657
    %659 = vrot.lane.b32.xlu0 %v245, 80
    %v660 = vpop.permute.xlu0 %659
    %661 = vrot.lane.b32.xlu0 %v250, 80
    %v662 = vpop.permute.xlu0 %661
    %v663 = vsel %vm261, %v656, 0
    %v665 = vsel %vm261, %v658, 0
    %v667 = vsel %vm261, %v660, 0
    %v669 = vsel %vm261, %v662, 0
    %671 = vmatprep.subr.mxu0 0.0
    %672 = vmatpush1.xpose.msra.mxu0 %v667
    %673 = vmatprep.subr.mxu0 0.0
    %674 = vmatpush1.xpose.msra.mxu0 %v669
    %675 = vmatprep.subr.mxu0 0.0
    %676 = vmatpush1.xpose.msra.mxu0 0.0
    %677 = vmatprep.subr.mxu0 0.0
    %678 = vmatpush1.xpose.msra.mxu0 0.0
    %679 = vmatprep.subr.mxu0 0.0
    %680 = vmatpush1.xpose.msra.mxu0 0.0
    %681 = vmatprep.subr.mxu0 0.0
    %682 = vmatpush1.xpose.msra.mxu0 0.0
    %683 = vmatprep.subr.mxu0 0.0
    %684 = vmatpush1.xpose.msra.mxu0 0.0
    %685 = vmatprep.subr.mxu0 0.0
    %686 = vmatpush1.xpose.msra.mxu0 0.0
    %687 = vmatprep.subr.mxu0 0.0
    %688 = vmatpush1.xpose.msra.mxu0 0.0
    %689 = vmatprep.subr.mxu0 0.0
    %690 = vmatpush1.xpose.msra.mxu0 0.0
    %691 = vmatprep.subr.mxu0 0.0
    %692 = vmatpush1.xpose.msra.mxu0 0.0
    %693 = vmatprep.subr.mxu0 0.0
    %694 = vmatpush1.xpose.msra.mxu0 0.0
    %695 = vmatprep.subr.mxu0 0.0
    %696 = vmatpush1.xpose.msra.mxu0 0.0
    %697 = vmatprep.subr.mxu0 0.0
    %698 = vmatpush1.xpose.msra.mxu0 0.0
    %699 = vmatprep.subr.mxu0 0.0
    %700 = vmatpush1.xpose.msra.mxu0 0.0
    %701 = vmatprep.subr.mxu0 0.0
    %702 = vmatpush1.xpose.msra.mxu0 0.0
    %703 = vmatprep.subr.mxu0 0.0
    %704 = vmatpush1.xpose.msra.mxu0 0.0
    %705 = vmatprep.subr.mxu0 0.0
    %706 = vmatpush1.xpose.msra.mxu0 0.0
    %707 = vmatprep.subr.mxu0 0.0
    %708 = vmatpush1.xpose.msra.mxu0 0.0
    %709 = vmatprep.subr.mxu0 0.0
    %710 = vmatpush1.xpose.msra.mxu0 0.0
    %711 = vmatprep.subr.mxu0 0.0
    %712 = vmatpush1.xpose.msra.mxu0 0.0
    %713 = vmatprep.subr.mxu0 0.0
    %714 = vmatpush1.xpose.msra.mxu0 0.0
    %715 = vmatprep.subr.mxu0 0.0
    %716 = vmatpush1.xpose.msra.mxu0 0.0
    %717 = vmatprep.subr.mxu0 0.0
    %718 = vmatpush1.xpose.msra.mxu0 0.0
    %719 = vmatprep.subr.mxu0 0.0
    %720 = vmatpush1.xpose.msra.mxu0 0.0
    %721 = vmatprep.subr.mxu0 0.0
    %722 = vmatpush1.xpose.msra.mxu0 0.0
    %723 = vmatprep.subr.mxu0 0.0
    %724 = vmatpush1.xpose.msra.mxu0 0.0
    %725 = vmatprep.subr.mxu0 0.0
    %726 = vmatpush1.xpose.msra.mxu0 0.0
    %727 = vmatprep.subr.mxu0 0.0
    %728 = vmatpush1.xpose.msra.mxu0 0.0
    %729 = vmatprep.subr.mxu0 0.0
    %730 = vmatpush1.xpose.msra.mxu0 0.0
    %731 = vmatprep.subr.mxu0 0.0
    %732 = vmatpush1.xpose.msra.mxu0 0.0
    %733 = vmatprep.subr.mxu0 0.0
    %734 = vmatpush1.xpose.msra.mxu0 0.0
    %735 = vmatprep.mubr.f32.mxu0 0.0
    %736 = vmatmul.mubr.f32.gmra.mrb[0].mxu0 %v663
    %v737 = vpop.f32.mrb[0].mxu0
    %v738 = vadd.f32 %v253, %v737
    %v739 = vpop.f32.mrb[0].mxu0
    %740 = vmatprep.mubr.f32.mxu0 0.0
    %741 = vmatmul.mubr.f32.gmra.mrb[0].mxu0 %v665
    %v742 = vpop.f32.mrb[0].mxu0
    %v743 = vadd.f32 %v254, %v742
    %v744 = vpop.f32.mrb[0].mxu0
    %745 = vdwg.mxu0
    %v746 = vsel %vm345, %v738, -inf
    %747 = vmax.xlane.f32.xlu0 %v746
    %v748 = vpop.xlane.xlu0 %747
    %v749 = vsel %vm345, %v743, -inf
    %750 = vmax.xlane.f32.xlu0 %v749
    %v751 = vpop.xlane.xlu0 %750
    %v752 = vsub.f32 %v738, %v748
    %v753 = vsub.f32 %v743, %v751
    %v754 = vmul.f32 %v752, 1.442695
    %v755 = vpow.pop %v754
    %v756 = vmul.f32 %v753, 1.442695
    %v757 = vpow.pop %v756
    %v758 = vsel %vm345, %v755, 0.0
    %759 = vadd.xlane.f32.xlu0 %v758
    %v760 = vpop.xlane.xlu0 %759
    %v761 = vsel %vm345, %v757, 0.0
    %762 = vadd.xlane.f32.xlu0 %v761
    %v763 = vpop.xlane.xlu0 %762
    %v764 = vrcp.pop %v760
    %v765 = vrcp.pop %v763
    %v766 = vmul.f32 %v755, %v764
    %v767 = vmul.f32 %v757, %v765
    %768 = vrot.lane.b32.xlu0 %v245, 48
    %v769 = vpop.permute.xlu0 %768
    %770 = vrot.lane.b32.xlu0 %v250, 48
    %v771 = vpop.permute.xlu0 %770
    %v775 = vsel %vm345, %v766, 0
    %v778 = vsel %vm345, %v767, 0
    %780 = vmatprep.subr.mxu0 0.0
    %781 = vmatpush1.msra.mxu0 %v769
    %782 = vmatprep.subr.mxu0 0.0
    %783 = vmatpush1.msra.mxu0 %v771
    %784 = vmatprep.subr.mxu0 0.0
    %785 = vmatpush1.msra.mxu0 0.0
    %786 = vmatprep.subr.mxu0 0.0
    %787 = vmatpush1.msra.mxu0 0.0
    %788 = vmatprep.subr.mxu0 0.0
    %789 = vmatpush1.msra.mxu0 0.0
    %790 = vmatprep.subr.mxu0 0.0
    %791 = vmatpush1.msra.mxu0 0.0
    %792 = vmatprep.subr.mxu0 0.0
    %793 = vmatpush1.msra.mxu0 0.0
    %794 = vmatprep.subr.mxu0 0.0
    %795 = vmatpush1.msra.mxu0 0.0
    %796 = vmatprep.subr.mxu0 0.0
    %797 = vmatpush1.msra.mxu0 0.0
    %798 = vmatprep.subr.mxu0 0.0
    %799 = vmatpush1.msra.mxu0 0.0
    %800 = vmatprep.subr.mxu0 0.0
    %801 = vmatpush1.msra.mxu0 0.0
    %802 = vmatprep.subr.mxu0 0.0
    %803 = vmatpush1.msra.mxu0 0.0
    %804 = vmatprep.subr.mxu0 0.0
    %805 = vmatpush1.msra.mxu0 0.0
    %806 = vmatprep.subr.mxu0 0.0
    %807 = vmatpush1.msra.mxu0 0.0
    %808 = vmatprep.subr.mxu0 0.0
    %809 = vmatpush1.msra.mxu0 0.0
    %810 = vmatprep.subr.mxu0 0.0
    %811 = vmatpush1.msra.mxu0 0.0
    %812 = vmatprep.subr.mxu0 0.0
    %813 = vmatpush1.msra.mxu0 0.0
    %814 = vmatprep.subr.mxu0 0.0
    %815 = vmatpush1.msra.mxu0 0.0
    %816 = vmatprep.subr.mxu0 0.0
    %817 = vmatpush1.msra.mxu0 0.0
    %818 = vmatprep.subr.mxu0 0.0
    %819 = vmatpush1.msra.mxu0 0.0
    %820 = vmatprep.subr.mxu0 0.0
    %821 = vmatpush1.msra.mxu0 0.0
    %822 = vmatprep.subr.mxu0 0.0
    %823 = vmatpush1.msra.mxu0 0.0
    %824 = vmatprep.subr.mxu0 0.0
    %825 = vmatpush1.msra.mxu0 0.0
    %826 = vmatprep.subr.mxu0 0.0
    %827 = vmatpush1.msra.mxu0 0.0
    %828 = vmatprep.subr.mxu0 0.0
    %829 = vmatpush1.msra.mxu0 0.0
    %830 = vmatprep.subr.mxu0 0.0
    %831 = vmatpush1.msra.mxu0 0.0
    %832 = vmatprep.subr.mxu0 0.0
    %833 = vmatpush1.msra.mxu0 0.0
    %834 = vmatprep.subr.mxu0 0.0
    %835 = vmatpush1.msra.mxu0 0.0
    %836 = vmatprep.subr.mxu0 0.0
    %837 = vmatpush1.msra.mxu0 0.0
    %838 = vmatprep.subr.mxu0 0.0
    %839 = vmatpush1.msra.mxu0 0.0
    %840 = vmatprep.subr.mxu0 0.0
    %841 = vmatpush1.msra.mxu0 0.0
    %842 = vmatprep.subr.mxu0 0.0
    %843 = vmatpush1.msra.mxu0 0.0
    %844 = vmatprep.mubr.f32.mxu0 0.0
    %845 = vmatmul.mubr.f32.gmra.mrb[0].mxu0 %v775
    %v846 = vpop.f32.mrb[0].mxu0
    %v847 = vadd.f32 0.0, %v846
    %v848 = vpop.f32.mrb[0].mxu0
    %849 = vmatprep.mubr.f32.mxu0 0.0
    %850 = vmatmul.mubr.f32.gmra.mrb[0].mxu0 %v778
    %v851 = vpop.f32.mrb[0].mxu0
    %v852 = vadd.f32 0.0, %v851
    %v853 = vpop.f32.mrb[0].mxu0
    %854 = vdwg.mxu0
    %855 = vrot.lane.b32.xlu0 %v245, 104
    %v856 = vpop.permute.xlu0 %855
    %857 = vrot.lane.b32.xlu0 %v250, 104
    %v858 = vpop.permute.xlu0 %857
    %859 = vrot.lane.b32.xlu0 %v245, 72
    %v860 = vpop.permute.xlu0 %859
    %861 = vrot.lane.b32.xlu0 %v250, 72
    %v862 = vpop.permute.xlu0 %861
    %v863 = vsel %vm261, %v856, 0
    %v865 = vsel %vm261, %v858, 0
    %v867 = vsel %vm261, %v860, 0
    %v869 = vsel %vm261, %v862, 0
    %871 = vmatprep.subr.mxu0 0.0
    %872 = vmatpush1.xpose.msra.mxu0 %v867
    %873 = vmatprep.subr.mxu0 0.0
    %874 = vmatpush1.xpose.msra.mxu0 %v869
    %875 = vmatprep.subr.mxu0 0.0
    %876 = vmatpush1.xpose.msra.mxu0 0.0
    %877 = vmatprep.subr.mxu0 0.0
    %878 = vmatpush1.xpose.msra.mxu0 0.0
    %879 = vmatprep.subr.mxu0 0.0
    %880 = vmatpush1.xpose.msra.mxu0 0.0
    %881 = vmatprep.subr.mxu0 0.0
    %882 = vmatpush1.xpose.msra.mxu0 0.0
    %883 = vmatprep.subr.mxu0 0.0
    %884 = vmatpush1.xpose.msra.mxu0 0.0
    %885 = vmatprep.subr.mxu0 0.0
    %886 = vmatpush1.xpose.msra.mxu0 0.0
    %887 = vmatprep.subr.mxu0 0.0
    %888 = vmatpush1.xpose.msra.mxu0 0.0
    %889 = vmatprep.subr.mxu0 0.0
    %890 = vmatpush1.xpose.msra.mxu0 0.0
    %891 = vmatprep.subr.mxu0 0.0
    %892 = vmatpush1.xpose.msra.mxu0 0.0
    %893 = vmatprep.subr.mxu0 0.0
    %894 = vmatpush1.xpose.msra.mxu0 0.0
    %895 = vmatprep.subr.mxu0 0.0
    %896 = vmatpush1.xpose.msra.mxu0 0.0
    %897 = vmatprep.subr.mxu0 0.0
    %898 = vmatpush1.xpose.msra.mxu0 0.0
    %899 = vmatprep.subr.mxu0 0.0
    %900 = vmatpush1.xpose.msra.mxu0 0.0
    %901 = vmatprep.subr.mxu0 0.0
    %902 = vmatpush1.xpose.msra.mxu0 0.0
    %903 = vmatprep.subr.mxu0 0.0
    %904 = vmatpush1.xpose.msra.mxu0 0.0
    %905 = vmatprep.subr.mxu0 0.0
    %906 = vmatpush1.xpose.msra.mxu0 0.0
    %907 = vmatprep.subr.mxu0 0.0
    %908 = vmatpush1.xpose.msra.mxu0 0.0
    %909 = vmatprep.subr.mxu0 0.0
    %910 = vmatpush1.xpose.msra.mxu0 0.0
    %911 = vmatprep.subr.mxu0 0.0
    %912 = vmatpush1.xpose.msra.mxu0 0.0
    %913 = vmatprep.subr.mxu0 0.0
    %914 = vmatpush1.xpose.msra.mxu0 0.0
    %915 = vmatprep.subr.mxu0 0.0
    %916 = vmatpush1.xpose.msra.mxu0 0.0
    %917 = vmatprep.subr.mxu0 0.0
    %918 = vmatpush1.xpose.msra.mxu0 0.0
    %919 = vmatprep.subr.mxu0 0.0
    %920 = vmatpush1.xpose.msra.mxu0 0.0
    %921 = vmatprep.subr.mxu0 0.0
    %922 = vmatpush1.xpose.msra.mxu0 0.0
    %923 = vmatprep.subr.mxu0 0.0
    %924 = vmatpush1.xpose.msra.mxu0 0.0
    %925 = vmatprep.subr.mxu0 0.0
    %926 = vmatpush1.xpose.msra.mxu0 0.0
    %927 = vmatprep.subr.mxu0 0.0
    %928 = vmatpush1.xpose.msra.mxu0 0.0
    %929 = vmatprep.subr.mxu0 0.0
    %930 = vmatpush1.xpose.msra.mxu0 0.0
    %931 = vmatprep.subr.mxu0 0.0
    %932 = vmatpush1.xpose.msra.mxu0 0.0
    %933 = vmatprep.subr.mxu0 0.0
    %934 = vmatpush1.xpose.msra.mxu0 0.0
    %935 = vmatprep.mubr.f32.mxu0 0.0
    %936 = vmatmul.mubr.f32.gmra.mrb[0].mxu0 %v863
    %v937 = vpop.f32.mrb[0].mxu0
    %v938 = vadd.f32 %v253, %v937
    %v939 = vpop.f32.mrb[0].mxu0
    %940 = vmatprep.mubr.f32.mxu0 0.0
    %941 = vmatmul.mubr.f32.gmra.mrb[0].mxu0 %v865
    %v942 = vpop.f32.mrb[0].mxu0
    %v943 = vadd.f32 %v254, %v942
    %v944 = vpop.f32.mrb[0].mxu0
    %945 = vdwg.mxu0
    %v946 = vsel %vm345, %v938, -inf
    %947 = vmax.xlane.f32.xlu0 %v946
    %v948 = vpop.xlane.xlu0 %947
    %v949 = vsel %vm345, %v943, -inf
    %950 = vmax.xlane.f32.xlu0 %v949
    %v951 = vpop.xlane.xlu0 %950
    %v952 = vsub.f32 %v938, %v948
    %v953 = vsub.f32 %v943, %v951
    %v954 = vmul.f32 %v952, 1.442695
    %v955 = vpow.pop %v954
    %v956 = vmul.f32 %v953, 1.442695
    %v957 = vpow.pop %v956
    %v958 = vsel %vm345, %v955, 0.0
    %959 = vadd.xlane.f32.xlu0 %v958
    %v960 = vpop.xlane.xlu0 %959
    %v961 = vsel %vm345, %v957, 0.0
    %962 = vadd.xlane.f32.xlu0 %v961
    %v963 = vpop.xlane.xlu0 %962
    %v964 = vrcp.pop %v960
    %v965 = vrcp.pop %v963
    %v966 = vmul.f32 %v955, %v964
    %v967 = vmul.f32 %v957, %v965
    %968 = vrot.lane.b32.xlu0 %v245, 40
    %v969 = vpop.permute.xlu0 %968
    %970 = vrot.lane.b32.xlu0 %v250, 40
    %v971 = vpop.permute.xlu0 %970
    %v975 = vsel %vm345, %v966, 0
    %v978 = vsel %vm345, %v967, 0
    %980 = vmatprep.subr.mxu0 0.0
    %981 = vmatpush1.msra.mxu0 %v969
    %982 = vmatprep.subr.mxu0 0.0
    %983 = vmatpush1.msra.mxu0 %v971
    %984 = vmatprep.subr.mxu0 0.0
    %985 = vmatpush1.msra.mxu0 0.0
    %986 = vmatprep.subr.mxu0 0.0
    %987 = vmatpush1.msra.mxu0 0.0
    %988 = vmatprep.subr.mxu0 0.0
    %989 = vmatpush1.msra.mxu0 0.0
    %990 = vmatprep.subr.mxu0 0.0
    %991 = vmatpush1.msra.mxu0 0.0
    %992 = vmatprep.subr.mxu0 0.0
    %993 = vmatpush1.msra.mxu0 0.0
    %994 = vmatprep.subr.mxu0 0.0
    %995 = vmatpush1.msra.mxu0 0.0
    %996 = vmatprep.subr.mxu0 0.0
    %997 = vmatpush1.msra.mxu0 0.0
    %998 = vmatprep.subr.mxu0 0.0
    %999 = vmatpush1.msra.mxu0 0.0
    %1000 = vmatprep.subr.mxu0 0.0
    %1001 = vmatpush1.msra.mxu0 0.0
    %1002 = vmatprep.subr.mxu0 0.0
    %1003 = vmatpush1.msra.mxu0 0.0
    %1004 = vmatprep.subr.mxu0 0.0
    %1005 = vmatpush1.msra.mxu0 0.0
    %1006 = vmatprep.subr.mxu0 0.0
    %1007 = vmatpush1.msra.mxu0 0.0
    %1008 = vmatprep.subr.mxu0 0.0
    %1009 = vmatpush1.msra.mxu0 0.0
    %1010 = vmatprep.subr.mxu0 0.0
    %1011 = vmatpush1.msra.mxu0 0.0
    %1012 = vmatprep.subr.mxu0 0.0
    %1013 = vmatpush1.msra.mxu0 0.0
    %1014 = vmatprep.subr.mxu0 0.0
    %1015 = vmatpush1.msra.mxu0 0.0
    %1016 = vmatprep.subr.mxu0 0.0
    %1017 = vmatpush1.msra.mxu0 0.0
    %1018 = vmatprep.subr.mxu0 0.0
    %1019 = vmatpush1.msra.mxu0 0.0
    %1020 = vmatprep.subr.mxu0 0.0
    %1021 = vmatpush1.msra.mxu0 0.0
    %1022 = vmatprep.subr.mxu0 0.0
    %1023 = vmatpush1.msra.mxu0 0.0
    %1024 = vmatprep.subr.mxu0 0.0
    %1025 = vmatpush1.msra.mxu0 0.0
    %1026 = vmatprep.subr.mxu0 0.0
    %1027 = vmatpush1.msra.mxu0 0.0
    %1028 = vmatprep.subr.mxu0 0.0
    %1029 = vmatpush1.msra.mxu0 0.0
    %1030 = vmatprep.subr.mxu0 0.0
    %1031 = vmatpush1.msra.mxu0 0.0
    %1032 = vmatprep.subr.mxu0 0.0
    %1033 = vmatpush1.msra.mxu0 0.0
    %1034 = vmatprep.subr.mxu0 0.0
    %1035 = vmatpush1.msra.mxu0 0.0
    %1036 = vmatprep.subr.mxu0 0.0
    %1037 = vmatpush1.msra.mxu0 0.0
    %1038 = vmatprep.subr.mxu0 0.0
    %1039 = vmatpush1.msra.mxu0 0.0
    %1040 = vmatprep.subr.mxu0 0.0
    %1041 = vmatpush1.msra.mxu0 0.0
    %1042 = vmatprep.subr.mxu0 0.0
    %1043 = vmatpush1.msra.mxu0 0.0
    %1044 = vmatprep.mubr.f32.mxu0 0.0
    %1045 = vmatmul.mubr.f32.gmra.mrb[0].mxu0 %v975
    %v1046 = vpop.f32.mrb[0].mxu0
    %v1047 = vadd.f32 0.0, %v1046
    %v1048 = vpop.f32.mrb[0].mxu0
    %1049 = vmatprep.mubr.f32.mxu0 0.0
    %1050 = vmatmul.mubr.f32.gmra.mrb[0].mxu0 %v978
    %v1051 = vpop.f32.mrb[0].mxu0
    %v1052 = vadd.f32 0.0, %v1051
    %v1053 = vpop.f32.mrb[0].mxu0
    %1054 = vdwg.mxu0
    %1057 = vrot.lane.b32.xlu0 %v647, 8
    %v1058 = vpop.permute.xlu0 %1057
    %1059 = vrot.lane.b32.xlu0 %v652, 8
    %v1060 = vpop.permute.xlu0 %1059
    %1065 = vrot.lane.b32.xlu0 %v847, 16
    %v1066 = vpop.permute.xlu0 %1065
    %1067 = vrot.lane.b32.xlu0 %v852, 16
    %v1068 = vpop.permute.xlu0 %1067
    %1073 = vrot.lane.b32.xlu0 %v1047, 24
    %v1074 = vpop.permute.xlu0 %1073
    %1075 = vrot.lane.b32.xlu0 %v1052, 24
    %v1076 = vpop.permute.xlu0 %1075
    %v1079 = vsel %vm261, %v447, %v1058
    %v1080 = vsel %vm261, %v452, %v1060
    %v1081 = vsel %vm345, %v1079, %v1066
    %v1082 = vsel %vm345, %v1080, %v1068
    %vm1083 = vcmask 195584
    %v1084 = vsel %vm1083, %v1081, %v1074
    %v1085 = vsel %vm1083, %v1082, %v1076
    %v1086 = vld [vmem:[%s6] sm:$0xff]
    %v1087 = vld [vmem:[%s6 + $0x8] sm:$0xff]
    %v1088 = vld [vmem:[%s6 + $0x10] sm:$0xff]
    %v1089 = vld [vmem:[%s6 + $0x18] sm:$0xff]
    %v1090 = vld [vmem:[%s7] sm:$0x1]
    %v1092 = vlaneseq
    %v1093 = vshrl.u32 %v1092, 7
    %v1094 = vsub.s32 0, %v1093
    %v1095 = vrot.slane %v1090, %v1094
    %v1098 = vsel %vm171, %v1084, 0
    %v1101 = vsel %vm171, %v1085, 0
    %1103 = vmatprep.subr.mxu0 0.0
    %1104 = vmatpush1.msra.mxu0 %v1086
    %1105 = vmatprep.subr.mxu0 0.0
    %1106 = vmatpush1.msra.mxu0 %v1087
    %1107 = vmatprep.subr.mxu0 0.0
    %1108 = vmatpush1.msra.mxu0 %v1088
    %1109 = vmatprep.subr.mxu0 0.0
    %1110 = vmatpush1.msra.mxu0 %v1089
    %1111 = vmatprep.subr.mxu0 0.0
    %1112 = vmatpush1.msra.mxu0 0.0
    %1113 = vmatprep.subr.mxu0 0.0
    %1114 = vmatpush1.msra.mxu0 0.0
    %1115 = vmatprep.subr.mxu0 0.0
    %1116 = vmatpush1.msra.mxu0 0.0
    %1117 = vmatprep.subr.mxu0 0.0
    %1118 = vmatpush1.msra.mxu0 0.0
    %1119 = vmatprep.subr.mxu0 0.0
    %1120 = vmatpush1.msra.mxu0 0.0
    %1121 = vmatprep.subr.mxu0 0.0
    %1122 = vmatpush1.msra.mxu0 0.0
    %1123 = vmatprep.subr.mxu0 0.0
    %1124 = vmatpush1.msra.mxu0 0.0
    %1125 = vmatprep.subr.mxu0 0.0
    %1126 = vmatpush1.msra.mxu0 0.0
    %1127 = vmatprep.subr.mxu0 0.0
    %1128 = vmatpush1.msra.mxu0 0.0
    %1129 = vmatprep.subr.mxu0 0.0
    %1130 = vmatpush1.msra.mxu0 0.0
    %1131 = vmatprep.subr.mxu0 0.0
    %1132 = vmatpush1.msra.mxu0 0.0
    %1133 = vmatprep.subr.mxu0 0.0
    %1134 = vmatpush1.msra.mxu0 0.0
    %1135 = vmatprep.subr.mxu0 0.0
    %1136 = vmatpush1.msra.mxu0 0.0
    %1137 = vmatprep.subr.mxu0 0.0
    %1138 = vmatpush1.msra.mxu0 0.0
    %1139 = vmatprep.subr.mxu0 0.0
    %1140 = vmatpush1.msra.mxu0 0.0
    %1141 = vmatprep.subr.mxu0 0.0
    %1142 = vmatpush1.msra.mxu0 0.0
    %1143 = vmatprep.subr.mxu0 0.0
    %1144 = vmatpush1.msra.mxu0 0.0
    %1145 = vmatprep.subr.mxu0 0.0
    %1146 = vmatpush1.msra.mxu0 0.0
    %1147 = vmatprep.subr.mxu0 0.0
    %1148 = vmatpush1.msra.mxu0 0.0
    %1149 = vmatprep.subr.mxu0 0.0
    %1150 = vmatpush1.msra.mxu0 0.0
    %1151 = vmatprep.subr.mxu0 0.0
    %1152 = vmatpush1.msra.mxu0 0.0
    %1153 = vmatprep.subr.mxu0 0.0
    %1154 = vmatpush1.msra.mxu0 0.0
    %1155 = vmatprep.subr.mxu0 0.0
    %1156 = vmatpush1.msra.mxu0 0.0
    %1157 = vmatprep.subr.mxu0 0.0
    %1158 = vmatpush1.msra.mxu0 0.0
    %1159 = vmatprep.subr.mxu0 0.0
    %1160 = vmatpush1.msra.mxu0 0.0
    %1161 = vmatprep.subr.mxu0 0.0
    %1162 = vmatpush1.msra.mxu0 0.0
    %1163 = vmatprep.subr.mxu0 0.0
    %1164 = vmatpush1.msra.mxu0 0.0
    %1165 = vmatprep.subr.mxu0 0.0
    %1166 = vmatpush1.msra.mxu0 0.0
    %1167 = vmatprep.mubr.f32.mxu0 0.0
    %1168 = vmatmul.mubr.f32.gmra.mrb[0].mxu0 %v1098
    %v1169 = vpop.f32.mrb[0].mxu0
    %v1170 = vadd.f32 %v1095, %v1169
    %v1171 = vpop.f32.mrb[0].mxu0
    %1172 = vmatprep.mubr.f32.mxu0 0.0
    %1173 = vmatmul.mubr.f32.gmra.mrb[0].mxu0 %v1101
    %v1174 = vpop.f32.mrb[0].mxu0
    %v1175 = vadd.f32 %v1095, %v1174
    %v1176 = vpop.f32.mrb[0].mxu0
    %1177 = vdwg.mxu0
    %v1178 = vadd.f32 %v152, %v1170
    %v1179 = vadd.f32 %v157, %v1175
    %v1180 = vld [vmem:[%s8] sm:$0x1]
    %v1181 = vld [vmem:[%s9] sm:$0x1]
    %v1182 = vsel %vm171, %v1178, 0.0
    %1183 = vadd.xlane.f32.xlu0 %v1182
    %v1184 = vpop.xlane.xlu0 %1183
    %v1185 = vsel %vm171, %v1179, 0.0
    %1186 = vadd.xlane.f32.xlu0 %v1185
    %v1187 = vpop.xlane.xlu0 %1186
    %v1188 = vrcp.pop 32.0
    %v1189 = vmul.f32 %v1184, %v1188
    %v1190 = vmul.f32 %v1187, %v1188
    %v1191 = vsub.f32 %v1178, %v1189
    %v1192 = vsub.f32 %v1179, %v1190
    %v1193 = vmul.f32 %v1191, %v1191
    %v1194 = vmul.f32 %v1192, %v1192
    %v1195 = vsel %vm171, %v1193, 0.0
    %1196 = vadd.xlane.f32.xlu0 %v1195
    %v1197 = vpop.xlane.xlu0 %1196
    %v1198 = vsel %vm171, %v1194, 0.0
    %1199 = vadd.xlane.f32.xlu0 %v1198
    %v1200 = vpop.xlane.xlu0 %1199
    %v1201 = vmul.f32 %v1197, %v1188
    %v1202 = vmul.f32 %v1200, %v1188
    %v1203 = vadd.f32 %v1201, 1e-05
    %v1204 = vadd.f32 %v1202, 1e-05
    %v1205 = vrsqrt.pop %v1203
    %v1206 = vrsqrt.pop %v1204
    %v1207 = vmul.f32 %v1191, %v1205
    %v1208 = vmul.f32 %v1192, %v1206
    %v1210 = vlaneseq
    %v1211 = vshrl.u32 %v1210, 7
    %v1212 = vsub.s32 0, %v1211
    %v1213 = vrot.slane %v1180, %v1212
    %v1215 = vmul.f32 %v1207, %v1213
    %v1216 = vmul.f32 %v1208, %v1213
    %v1218 = vlaneseq
    %v1219 = vshrl.u32 %v1218, 7
    %v1220 = vsub.s32 0, %v1219
    %v1221 = vrot.slane %v1181, %v1220
    %v1223 = vadd.f32 %v1215, %v1221
    %v1224 = vadd.f32 %v1216, %v1221
    %v1225 = vld [vmem:[%s10] sm:$0xff]
    %v1226 = vld [vmem:[%s10 + $0x8] sm:$0xff]
    %v1227 = vld [vmem:[%s10 + $0x10] sm:$0xff]
    %v1228 = vld [vmem:[%s10 + $0x18] sm:$0xff]
    %v1229 = vld [vmem:[%s11] sm:$0x1]
    %v1231 = vlaneseq
    %v1232 = vshrl.u32 %v1231, 7
    %v1233 = vsub.s32 0, %v1232
    %v1234 = vrot.slane %v1229, %v1233
    %v1237 = vsel %vm171, %v1223, 0
    %v1240 = vsel %vm171, %v1224, 0
    %1242 = vmatprep.subr.mxu0 0.0
    %1243 = vmatpush1.msra.mxu0 %v1225
    %1244 = vmatprep.subr.mxu0 0.0
    %1245 = vmatpush1.msra.mxu0 %v1226
    %1246 = vmatprep.subr.mxu0 0.0
    %1247 = vmatpush1.msra.mxu0 %v1227
    %1248 = vmatprep.subr.mxu0 0.0
    %1249 = vmatpush1.msra.mxu0 %v1228
    %1250 = vmatprep.subr.mxu0 0.0
    %1251 = vmatpush1.msra.mxu0 0.0
    %1252 = vmatprep.subr.mxu0 0.0
    %1253 = vmatpush1.msra.mxu0 0.0
    %1254 = vmatprep.subr.mxu0 0.0
    %1255 = vmatpush1.msra.mxu0 0.0
    %1256 = vmatprep.subr.mxu0 0.0
    %1257 = vmatpush1.msra.mxu0 0.0
    %1258 = vmatprep.subr.mxu0 0.0
    %1259 = vmatpush1.msra.mxu0 0.0
    %1260 = vmatprep.subr.mxu0 0.0
    %1261 = vmatpush1.msra.mxu0 0.0
    %1262 = vmatprep.subr.mxu0 0.0
    %1263 = vmatpush1.msra.mxu0 0.0
    %1264 = vmatprep.subr.mxu0 0.0
    %1265 = vmatpush1.msra.mxu0 0.0
    %1266 = vmatprep.subr.mxu0 0.0
    %1267 = vmatpush1.msra.mxu0 0.0
    %1268 = vmatprep.subr.mxu0 0.0
    %1269 = vmatpush1.msra.mxu0 0.0
    %1270 = vmatprep.subr.mxu0 0.0
    %1271 = vmatpush1.msra.mxu0 0.0
    %1272 = vmatprep.subr.mxu0 0.0
    %1273 = vmatpush1.msra.mxu0 0.0
    %1274 = vmatprep.subr.mxu0 0.0
    %1275 = vmatpush1.msra.mxu0 0.0
    %1276 = vmatprep.subr.mxu0 0.0
    %1277 = vmatpush1.msra.mxu0 0.0
    %1278 = vmatprep.subr.mxu0 0.0
    %1279 = vmatpush1.msra.mxu0 0.0
    %1280 = vmatprep.subr.mxu0 0.0
    %1281 = vmatpush1.msra.mxu0 0.0
    %1282 = vmatprep.subr.mxu0 0.0
    %1283 = vmatpush1.msra.mxu0 0.0
    %1284 = vmatprep.subr.mxu0 0.0
    %1285 = vmatpush1.msra.mxu0 0.0
    %1286 = vmatprep.subr.mxu0 0.0
    %1287 = vmatpush1.msra.mxu0 0.0
    %1288 = vmatprep.subr.mxu0 0.0
    %1289 = vmatpush1.msra.mxu0 0.0
    %1290 = vmatprep.subr.mxu0 0.0
    %1291 = vmatpush1.msra.mxu0 0.0
    %1292 = vmatprep.subr.mxu0 0.0
    %1293 = vmatpush1.msra.mxu0 0.0
    %1294 = vmatprep.subr.mxu0 0.0
    %1295 = vmatpush1.msra.mxu0 0.0
    %1296 = vmatprep.subr.mxu0 0.0
    %1297 = vmatpush1.msra.mxu0 0.0
    %1298 = vmatprep.subr.mxu0 0.0
    %1299 = vmatpush1.msra.mxu0 0.0
    %1300 = vmatprep.subr.mxu0 0.0
    %1301 = vmatpush1.msra.mxu0 0.0
    %1302 = vmatprep.subr.mxu0 0.0
    %1303 = vmatpush1.msra.mxu0 0.0
    %1304 = vmatprep.subr.mxu0 0.0
    %1305 = vmatpush1.msra.mxu0 0.0
    %1306 = vmatprep.mubr.f32.mxu0 0.0
    %1307 = vmatmul.mubr.f32.gmra.mrb[0].mxu0 %v1237
    %v1308 = vpop.f32.mrb[0].mxu0
    %v1309 = vadd.f32 %v1234, %v1308
    %v1310 = vpop.f32.mrb[0].mxu0
    %1311 = vmatprep.mubr.f32.mxu0 0.0
    %1312 = vmatmul.mubr.f32.gmra.mrb[0].mxu0 %v1240
    %v1313 = vpop.f32.mrb[0].mxu0
    %v1314 = vadd.f32 %v1234, %v1313
    %v1315 = vpop.f32.mrb[0].mxu0
    %1316 = vdwg.mxu0
    %v1317 = vmul.f32 %v1309, %v1309
    %v1318 = vmul.f32 %v1314, %v1314
    %v1319 = vmul.f32 %v1309, %v1317
    %v1320 = vmul.f32 %v1314, %v1318
    %v1321 = vmul.f32 %v1319, 0.044715
    %v1322 = vmul.f32 %v1320, 0.044715
    %v1323 = vadd.f32 %v1309, %v1321
    %v1324 = vadd.f32 %v1314, %v1322
    %v1325 = vmul.f32 %v1323, 0.7978846
    %v1326 = vmul.f32 %v1324, 0.7978846
    %v1327 = vtanh.pop %v1325
    %v1328 = vtanh.pop %v1326
    %v1329 = vadd.f32 %v1327, 1.0
    %v1330 = vadd.f32 %v1328, 1.0
    %v1331 = vmul.f32 %v1329, 0.5
    %v1332 = vmul.f32 %v1330, 0.5
    %v1333 = vmul.f32 %v1309, %v1331
    %v1334 = vmul.f32 %v1314, %v1332
    %v1335 = vld [vmem:[%s12] sm:$0xff]
    %v1336 = vld [vmem:[%s12 + $0x8] sm:$0xff]
    %v1337 = vld [vmem:[%s12 + $0x10] sm:$0xff]
    %v1338 = vld [vmem:[%s12 + $0x18] sm:$0xff]
    %v1339 = vld [vmem:[%s12 + $0x20] sm:$0xff]
    %v1340 = vld [vmem:[%s12 + $0x28] sm:$0xff]
    %v1341 = vld [vmem:[%s12 + $0x30] sm:$0xff]
    %v1342 = vld [vmem:[%s12 + $0x38] sm:$0xff]
    %v1343 = vld [vmem:[%s13] sm:$0x1]
    %v1345 = vlaneseq
    %v1346 = vshrl.u32 %v1345, 7
    %v1347 = vsub.s32 0, %v1346
    %v1348 = vrot.slane %v1343, %v1347
    %v1351 = vsel %vm78, %v1333, 0
    %v1354 = vsel %vm78, %v1334, 0
    %1356 = vmatprep.subr.mxu0 0.0
    %1357 = vmatpush1.msra.mxu0 %v1335
    %1358 = vmatprep.subr.mxu0 0.0
    %1359 = vmatpush1.msra.mxu0 %v1336
    %1360 = vmatprep.subr.mxu0 0.0
    %1361 = vmatpush1.msra.mxu0 %v1337
    %1362 = vmatprep.subr.mxu0 0.0
    %1363 = vmatpush1.msra.mxu0 %v1338
    %1364 = vmatprep.subr.mxu0 0.0
    %1365 = vmatpush1.msra.mxu0 %v1339
    %1366 = vmatprep.subr.mxu0 0.0
    %1367 = vmatpush1.msra.mxu0 %v1340
    %1368 = vmatprep.subr.mxu0 0.0
    %1369 = vmatpush1.msra.mxu0 %v1341
    %1370 = vmatprep.subr.mxu0 0.0
    %1371 = vmatpush1.msra.mxu0 %v1342
    %1372 = vmatprep.subr.mxu0 0.0
    %1373 = vmatpush1.msra.mxu0 0.0
    %1374 = vmatprep.subr.mxu0 0.0
    %1375 = vmatpush1.msra.mxu0 0.0
    %1376 = vmatprep.subr.mxu0 0.0
    %1377 = vmatpush1.msra.mxu0 0.0
    %1378 = vmatprep.subr.mxu0 0.0
    %1379 = vmatpush1.msra.mxu0 0.0
    %1380 = vmatprep.subr.mxu0 0.0
    %1381 = vmatpush1.msra.mxu0 0.0
    %1382 = vmatprep.subr.mxu0 0.0
    %1383 = vmatpush1.msra.mxu0 0.0
    %1384 = vmatprep.subr.mxu0 0.0
    %1385 = vmatpush1.msra.mxu0 0.0
    %1386 = vmatprep.subr.mxu0 0.0
    %1387 = vmatpush1.msra.mxu0 0.0
    %1388 = vmatprep.subr.mxu0 0.0
    %1389 = vmatpush1.msra.mxu0 0.0
    %1390 = vmatprep.subr.mxu0 0.0
    %1391 = vmatpush1.msra.mxu0 0.0
    %1392 = vmatprep.subr.mxu0 0.0
    %1393 = vmatpush1.msra.mxu0 0.0
    %1394 = vmatprep.subr.mxu0 0.0
    %1395 = vmatpush1.msra.mxu0 0.0
    %1396 = vmatprep.subr.mxu0 0.0
    %1397 = vmatpush1.msra.mxu0 0.0
    %1398 = vmatprep.subr.mxu0 0.0
    %1399 = vmatpush1.msra.mxu0 0.0
    %1400 = vmatprep.subr.mxu0 0.0
    %1401 = vmatpush1.msra.mxu0 0.0
    %1402 = vmatprep.subr.mxu0 0.0
    %1403 = vmatpush1.msra.mxu0 0.0
    %1404 = vmatprep.subr.mxu0 0.0
    %1405 = vmatpush1.msra.mxu0 0.0
    %1406 = vmatprep.subr.mxu0 0.0
    %1407 = vmatpush1.msra.mxu0 0.0
    %1408 = vmatprep.subr.mxu0 0.0
    %1409 = vmatpush1.msra.mxu0 0.0
    %1410 = vmatprep.subr.mxu0 0.0
    %1411 = vmatpush1.msra.mxu0 0.0
    %1412 = vmatprep.subr.mxu0 0.0
    %1413 = vmatpush1.msra.mxu0 0.0
    %1414 = vmatprep.subr.mxu0 0.0
    %1415 = vmatpush1.msra.mxu0 0.0
    %1416 = vmatprep.subr.mxu0 0.0
    %1417 = vmatpush1.msra.mxu0 0.0
    %1418 = vmatprep.subr.mxu0 0.0
    %1419 = vmatpush1.msra.mxu0 0.0
    %1420 = vmatprep.mubr.f32.mxu0 0.0
    %1421 = vmatmul.mubr.f32.gmra.mrb[0].mxu0 %v1351
    %v1422 = vpop.f32.mrb[0].mxu0
    %v1423 = vadd.f32 %v1348, %v1422
    %v1424 = vpop.f32.mrb[0].mxu0
    %1425 = vmatprep.mubr.f32.mxu0 0.0
    %1426 = vmatmul.mubr.f32.gmra.mrb[0].mxu0 %v1354
    %v1427 = vpop.f32.mrb[0].mxu0
    %v1428 = vadd.f32 %v1348, %v1427
    %v1429 = vpop.f32.mrb[0].mxu0
    %1430 = vdwg.mxu0
    %v1431 = vadd.f32 %v1223, %v1423
    %v1432 = vadd.f32 %v1224, %v1428
    %v1433 = vld [vmem:[%s14] sm:$0x1]
    %v1434 = vld [vmem:[%s15] sm:$0x1]
    %v1435 = vsel %vm171, %v1431, 0.0
    %1436 = vadd.xlane.f32.xlu0 %v1435
    %v1437 = vpop.xlane.xlu0 %1436
    %v1438 = vsel %vm171, %v1432, 0.0
    %1439 = vadd.xlane.f32.xlu0 %v1438
    %v1440 = vpop.xlane.xlu0 %1439
    %v1441 = vmul.f32 %v1437, %v1188
    %v1442 = vmul.f32 %v1440, %v1188
    %v1443 = vsub.f32 %v1431, %v1441
    %v1444 = vsub.f32 %v1432, %v1442
    %v1445 = vmul.f32 %v1443, %v1443
    %v1446 = vmul.f32 %v1444, %v1444
    %v1447 = vsel %vm171, %v1445, 0.0
    %1448 = vadd.xlane.f32.xlu0 %v1447
    %v1449 = vpop.xlane.xlu0 %1448
    %v1450 = vsel %vm171, %v1446, 0.0
    %1451 = vadd.xlane.f32.xlu0 %v1450
    %v1452 = vpop.xlane.xlu0 %1451
    %v1453 = vmul.f32 %v1449, %v1188
    %v1454 = vmul.f32 %v1452, %v1188
    %v1455 = vadd.f32 %v1453, 1e-05
    %v1456 = vadd.f32 %v1454, 1e-05
    %v1457 = vrsqrt.pop %v1455
    %v1458 = vrsqrt.pop %v1456
    %v1459 = vmul.f32 %v1443, %v1457
    %v1460 = vmul.f32 %v1444, %v1458
    %v1462 = vlaneseq
    %v1463 = vshrl.u32 %v1462, 7
    %v1464 = vsub.s32 0, %v1463
    %v1465 = vrot.slane %v1433, %v1464
    %v1467 = vmul.f32 %v1459, %v1465
    %v1468 = vmul.f32 %v1460, %v1465
    %v1470 = vlaneseq
    %v1471 = vshrl.u32 %v1470, 7
    %v1472 = vsub.s32 0, %v1471
    %v1473 = vrot.slane %v1434, %v1472
    %v1475 = vadd.f32 %v1467, %v1473
    %v1476 = vadd.f32 %v1468, %v1473
    %v1478 = vrot.slane %v1475, 1
    %1479 = vrot.lane.b32.xlu0 %v1478, 32
    %v1480 = vpop.permute.xlu0 %1479
    %v1482 = vrot.slane %v1475, 2
    %1483 = vrot.lane.b32.xlu0 %v1482, 64
    %v1484 = vpop.permute.xlu0 %1483
    %v1486 = vrot.slane %v1475, 3
    %1487 = vrot.lane.b32.xlu0 %v1486, 96
    %v1488 = vpop.permute.xlu0 %1487
    %v1490 = vrot.slane %v1475, 4
    %v1492 = vrot.slane %v1475, 5
    %1493 = vrot.lane.b32.xlu0 %v1492, 32
    %v1494 = vpop.permute.xlu0 %1493
    %v1496 = vrot.slane %v1475, 6
    %1497 = vrot.lane.b32.xlu0 %v1496, 64
    %v1498 = vpop.permute.xlu0 %1497
    %v1500 = vrot.slane %v1475, 7
    %1501 = vrot.lane.b32.xlu0 %v1500, 96
    %v1502 = vpop.permute.xlu0 %1501
    %v1504 = vsel %vm171, %v1475, %v1480
    %v1505 = vsel %vm78, %v1504, %v1484
    %vm1506 = vcmask 785408
    %v1507 = vsel %vm1506, %v1505, %v1488
    %v1508 = vsel %vm171, %v1490, %v1494
    %v1509 = vsel %vm78, %v1508, %v1498
    %v1510 = vsel %vm1506, %v1509, %v1502
    %v1512 = vrot.slane %v1476, 1
    %1513 = vrot.lane.b32.xlu0 %v1512, 32
    %v1514 = vpop.permute.xlu0 %1513
    %v1516 = vrot.slane %v1476, 2
    %1517 = vrot.lane.b32.xlu0 %v1516, 64
    %v1518 = vpop.permute.xlu0 %1517
    %v1520 = vrot.slane %v1476, 3
    %1521 = vrot.lane.b32.xlu0 %v1520, 96
    %v1522 = vpop.permute.xlu0 %1521
    %v1524 = vrot.slane %v1476, 4
    %v1526 = vrot.slane %v1476, 5
    %1527 = vrot.lane.b32.xlu0 %v1526, 32
    %v1528 = vpop.permute.xlu0 %1527
    %v1530 = vrot.slane %v1476, 6
    %1531 = vrot.lane.b32.xlu0 %v1530, 64
    %v1532 = vpop.permute.xlu0 %1531
    %v1534 = vrot.slane %v1476, 7
    %1535 = vrot.lane.b32.xlu0 %v1534, 96
    %v1536 = vpop.permute.xlu0 %1535
    %v1538 = vsel %vm171, %v1476, %v1514
    %v1539 = vsel %vm78, %v1538, %v1518
    %v1540 = vsel %vm1506, %v1539, %v1522
    %v1541 = vsel %vm171, %v1524, %v1528
    %v1542 = vsel %vm78, %v1541, %v1532
    %v1543 = vsel %vm1506, %v1542, %v1536
    %v1546 = vrot.slane %v1540, 7
    %v1547 = vrot.slane %v1543, 7
    %vm1550 = vcmask 1040384
    %v1551 = vsel %vm1550, %v1507, %v1546
    %v1552 = vsel %vm1550, %v1510, %v1547
    %v1555 = vcombine.low %v1551, %v1552
    %v1557 = vunpack.c.l.s4 1983009808
    %v1558 = vunpack.c.0.s8 %v1557
    %v1559 = vlaneseq
    %v1560 = vshrl.u32 %v1559, 7
    %v1561 = vsub.s32 %v1558, %v1560
    %v1562 = vrot.slane %v1555, %v1561
    %1564 = vst [vmem:[#allocation2] sm:$0xf] %v1562
    // Predicated region
    $region66: #{tpu_custom_call.1} parent=1 // pred_check
      _
    $region67: #{tpu_custom_call.1} parent=1 // pred_check_branch
      %1566 = sbr.rel (0) target = $region69
    $region68: #{tpu_custom_call.1} parent=1 // pred_region
      %s1568 = ssub.s32 64, 64
      %1569 = vsyncadd [#allocation3], %s1568
      %s1571 = sshll.u32 [#allocation2], 4
      %s1572 = int_to_ptr.vmem [resolvable:$true] %s1571
      %1574 = dma.vmem_to_hbm [thread:$0]  %s1572, 64, %s16, [#allocation3]
    $region69: #{tpu_custom_call.1} parent=1 // pred_fallthru
      _
    // Predicated region
    $region70: #{tpu_custom_call.1} parent=1 // pred_check
      _
    $region71: #{tpu_custom_call.1} parent=1 // pred_check_branch
      %1576 = sbr.rel (0) target = $region73
    $region72: #{tpu_custom_call.1} parent=1 // pred_region
      %1577 = dma.done [#allocation3], 64
    $region73: #{tpu_custom_call.1} parent=1 // pred_fallthru
      _
    %1578 = vsyncpa [#allocation3], 1

</llo_original>
